<compile_context>
chip_gen: v7x
topology: tpu7x:2x2x1
jax: 0.10.0
libtpu: 0.0.40
codegen_flags: <defaults>
</compile_context>

<pallas_src>
import functools

import jax
import jax.numpy as jnp
from jax import lax
from jax.experimental import pallas as pl
from jax.experimental.pallas import tpu as pltpu

KERNEL_MUL = 2.0
KERNEL_NUM = 5


def _dot_t(x, y):
    """x @ y.T on the MXU without an explicit transpose (contract last dims)."""
    return lax.dot_general(
        x, y,
        dimension_numbers=(((1,), (1,)), ((), ())),
        preferred_element_type=jnp.float32,
    )


def _loss_blocks(s_fog, s_deh, g, *, m, a, b):
    """Four quadrant blocks of the (2N, 2N) GMMD loss matrix for one problem.

    Shared fog_gt work (G.G^T, ||g||^2, l2_gg) is computed once and reused by
    both gaussian_kernel evaluations.  Matmuls run in the inputs' native dtype
    (bf16-friendly) with f32 accumulation; all elementwise math is f32.
    Returns (ss, sg, gs, gg) quadrants, each f32.
    """
    n_src = s_fog.shape[0]
    n_tgt = g.shape[0]
    n = n_src + n_tgt

    g32 = g.astype(jnp.float32)
    sq_g = jnp.sum(g32 * g32, axis=-1, keepdims=True)            # (Nt, 1)
    gg = _dot_t(g, g)                                            # (Nt, Nt)
    # ||x_i - x_j||^2 = ||x_i||^2 + ||x_j||^2 - 2<x_i, x_j>, clamped at 0
    # (gram-form cancellation can go slightly negative at fp32 epsilon).
    l2_gg = jnp.maximum(sq_g + sq_g.T - 2.0 * gg, 0.0)
    sum_gg = jnp.sum(l2_gg)

    def kernel_blocks(s):
        s32 = s.astype(jnp.float32)
        sq_s = jnp.sum(s32 * s32, axis=-1, keepdims=True)        # (Ns, 1)
        ss = _dot_t(s, s)
        sg = _dot_t(s, g)
        # G.S^T via a second tiny matmul rather than transposing sg: MXU has
        # huge slack here and this avoids an unaligned 16x16 XLU relayout.
        gs = _dot_t(g, s)
        l2_ss = jnp.maximum(sq_s + sq_s.T - 2.0 * ss, 0.0)
        l2_sg = jnp.maximum(sq_s + sq_g.T - 2.0 * sg, 0.0)
        l2_gs = jnp.maximum(sq_g + sq_s.T - 2.0 * gs, 0.0)

        # fix_sigma=None path: data-dependent bandwidth (scalar reduction over
        # all four L2 quadrants).
        bandwidth = (jnp.sum(l2_ss) + jnp.sum(l2_sg) + jnp.sum(l2_gs) + sum_gg
                     ) / float(n * n - n)
        bandwidth = bandwidth / (KERNEL_MUL ** (KERNEL_NUM // 2))
        neg_inv_bw = -1.0 / bandwidth

        def ksum(l2):
            # Hoisted division: one scalar multiply, then each bandwidth term
            # is a compile-time-constant scale of x.  exps go to the EUP slot.
            x = l2 * neg_inv_bw
            kv = jnp.exp(x)
            for i in range(1, KERNEL_NUM):
                kv = kv + jnp.exp(x * (1.0 / (KERNEL_MUL ** i)))
            return kv

        return ksum(l2_ss), ksum(l2_sg), ksum(l2_gs), ksum(l2_gg)

    k_fog = kernel_blocks(s_fog)
    k_deh = kernel_blocks(s_deh)
    return tuple(
        a * k_fog[q] + b * jnp.maximum(jnp.float32(0.0), m - k_deh[q])
        for q in range(4))


def _gmmd_kernel(fog_pred_ref, fog_gt_ref, dehazed_pred_ref, out_ref, *, m, a, b):
    ns = fog_pred_ref.shape[0]
    blk_ss, blk_sg, blk_gs, blk_gg = _loss_blocks(
        fog_pred_ref[...], dehazed_pred_ref[...], fog_gt_ref[...],
        m=m, a=a, b=b)
    out_ref[:ns, :ns] = blk_ss
    out_ref[:ns, ns:] = blk_sg
    out_ref[ns:, :ns] = blk_gs
    out_ref[ns:, ns:] = blk_gg


def _gmmd_batched_kernel(fog_pred_ref, fog_gt_ref, dehazed_pred_ref, out_ref,
                         *, m, a, b):
    b_tile, ns, _ = fog_pred_ref.shape
    n2 = out_ref.shape[0]
    for bb in range(b_tile):          # small static unroll (b_tile == 4)
        blk_ss, blk_sg, blk_gs, blk_gg = _loss_blocks(
            fog_pred_ref[bb], dehazed_pred_ref[bb], fog_gt_ref[bb],
            m=m, a=a, b=b)
        c0 = bb * n2                  # problem bb -> column block bb of the slab
        out_ref[:ns, c0:c0 + ns] = blk_ss
        out_ref[:ns, c0 + ns:c0 + n2] = blk_sg
        out_ref[ns:, c0:c0 + ns] = blk_gs
        out_ref[ns:, c0 + ns:c0 + n2] = blk_gg


def _cost_estimate(n_src, n_tgt, d, batch, in_itemsize):
    n2 = n_src + n_tgt
    # gg + per-source (ss, sg, gs) matmuls, two sources.
    mm_flops = 2 * d * (n_tgt * n_tgt + 2 * (n_src * n_src + 2 * n_src * n_tgt))
    ew_flops = 2 * (4 + 2 * KERNEL_NUM) * n2 * n2
    return pl.CostEstimate(
        flops=int(batch * (mm_flops + ew_flops)),
        transcendentals=int(batch * 2 * KERNEL_NUM * n2 * n2),
        bytes_accessed=int(batch * ((2 * n_src + n_tgt) * d * in_itemsize
                                    + n2 * n2 * 4)),
    )


def gmmd_loss(fog_pred, fog_gt, dehazed_pred, m=0.1, a=0.1, b=0.01):
    """Pallas implementation of GMMDLoss.forward (fix_sigma=None), one problem.

    Launch-bound at 16x16, so: no grid (no pipeline prologue/epilogue, no
    per-step overhead) and whole-array VMEM blocks.  Use gmmd_loss_batched to
    amortize the call overhead over many problems.
    """
    n_src, d = fog_pred.shape
    n_tgt, d_t = fog_gt.shape
    assert d == d_t and dehazed_pred.shape == (n_src, d), "shape mismatch"
    n2 = n_src + n_tgt
    kernel = functools.partial(_gmmd_kernel, m=float(m), a=float(a), b=float(b))
    vmem_spec = pl.BlockSpec(memory_space=pltpu.MemorySpace.VMEM)
    return pl.pallas_call(
        kernel,
        out_shape=jax.ShapeDtypeStruct((n2, n2), jnp.float32),
        in_specs=[vmem_spec, vmem_spec, vmem_spec],
        out_specs=vmem_spec,
        cost_estimate=_cost_estimate(n_src, n_tgt, d, 1,
                                     fog_pred.dtype.itemsize),
    )(fog_pred, fog_gt, dehazed_pred)


def gmmd_loss_batched(fog_pred, fog_gt, dehazed_pred, m=0.1, a=0.1, b=0.01,
                      b_tile=4):
    """B independent GMMD problems through one pallas_call.

    Grid = batch tiles, marked "parallel" (sharded across v7x's 2 TCs, neutral
    on v5e/v6e).  Each step writes a lane-dense (2N, b_tile*2N) slab; the
    (B, 2N, 2N) view is restored with a wrapper-side transpose.
    """
    bsz, n_src, d = fog_pred.shape
    _, n_tgt, _ = fog_gt.shape
    assert fog_gt.shape == (bsz, n_tgt, d), "shape mismatch"
    assert dehazed_pred.shape == (bsz, n_src, d), "shape mismatch"
    # TODO(synk): pad the batch axis if bsz is not a multiple of b_tile.
    assert bsz % b_tile == 0, "batch must be a multiple of b_tile"
    n2 = n_src + n_tgt

    kernel = functools.partial(_gmmd_batched_kernel,
                               m=float(m), a=float(a), b=float(b))
    out2d = pl.pallas_call(
        kernel,
        out_shape=jax.ShapeDtypeStruct((n2, bsz * n2), jnp.float32),
        grid=(bsz // b_tile,),
        in_specs=[
            pl.BlockSpec((b_tile, n_src, d), lambda i: (i, 0, 0)),
            pl.BlockSpec((b_tile, n_tgt, d), lambda i: (i, 0, 0)),
            pl.BlockSpec((b_tile, n_src, d), lambda i: (i, 0, 0)),
        ],
        out_specs=pl.BlockSpec((n2, b_tile * n2), lambda i: (0, i)),
        compiler_params=pltpu.CompilerParams(
            dimension_semantics=("parallel",)),
        cost_estimate=_cost_estimate(n_src, n_tgt, d, bsz,
                                     fog_pred.dtype.itemsize),
    )(fog_pred, fog_gt, dehazed_pred)
    # Layout plumbing only: (2N, B*2N) lane-dense slab -> (B, 2N, 2N).
    return out2d.reshape(n2, bsz, n2).transpose(1, 0, 2)


def _gmmd_loss_ref(fog_pred, fog_gt, dehazed_pred, m=0.1, a=0.1, b=0.01):
    """Pure-JAX reference mirroring the PyTorch code (for correctness check)."""
    def gk(source, target):
        total = jnp.concatenate([source, target], axis=0)
        n = total.shape[0]
        diff = total[None, :, :] - total[:, None, :]
        l2 = jnp.sum(diff * diff, axis=2)
        bw = jnp.sum(l2) / (n * n - n)
        bw = bw / (KERNEL_MUL ** (KERNEL_NUM // 2))
        return sum(jnp.exp(-l2 / (bw * (KERNEL_MUL ** i)))
                   for i in range(KERNEL_NUM))

    k1 = gk(fog_pred, fog_gt)
    k2 = gk(dehazed_pred, fog_gt)
    return a * k1 + b * jnp.maximum(0.0, m - k2)


if __name__ == "__main__":
    key = jax.random.PRNGKey(0)
    k1, k2, k3, k4 = jax.random.split(key, 4)

    # Module's stated shapes: 16 samples x 16 features, values in [0, 1).
    fog_pred = jax.random.uniform(k1, (16, 16), dtype=jnp.float32)
    fog_gt = jax.random.uniform(k2, (16, 16), dtype=jnp.float32)
    dehazed_pred = jax.random.uniform(k3, (16, 16), dtype=jnp.float32)

    out = jax.block_until_ready(gmmd_loss(fog_pred, fog_gt, dehazed_pred))
    ref = _gmmd_loss_ref(fog_pred, fog_gt, dehazed_pred)
    assert out.shape == (32, 32) and out.dtype == jnp.float32
    assert jnp.allclose(out, ref, atol=1e-4, rtol=1e-4), "single mismatch"

    # Batched path: 8 independent problems amortized over one pallas_call.
    bsz = 8
    kb1, kb2, kb3 = jax.random.split(k4, 3)
    fog_pred_b = jax.random.uniform(kb1, (bsz, 16, 16), dtype=jnp.float32)
    fog_gt_b = jax.random.uniform(kb2, (bsz, 16, 16), dtype=jnp.float32)
    dehazed_pred_b = jax.random.uniform(kb3, (bsz, 16, 16), dtype=jnp.float32)

    out_b = jax.block_until_ready(
        gmmd_loss_batched(fog_pred_b, fog_gt_b, dehazed_pred_b))
    ref_b = jax.vmap(_gmmd_loss_ref)(fog_pred_b, fog_gt_b, dehazed_pred_b)
    assert out_b.shape == (bsz, 32, 32) and out_b.dtype == jnp.float32
    assert jnp.allclose(out_b, ref_b, atol=1e-4, rtol=1e-4), "batched mismatch"

    print("KERNEL_OK")
</pallas_src>

<mosaic_0001>
module attributes {stable_mosaic.version = 11 : i64} {
  func.func @_gmmd_kernel(%arg0: memref<16x16xf32, #tpu.memory_space<vmem>>, %arg1: memref<16x16xf32, #tpu.memory_space<vmem>>, %arg2: memref<16x16xf32, #tpu.memory_space<vmem>>, %arg3: memref<32x32xf32, #tpu.memory_space<vmem>>) attributes {dimension_semantics = [], scalar_prefetch = 0 : i64, scratch_operands = 0 : i64, tpu.core_type = #tpu.core_type<tc>} {
    %c0 = arith.constant 0 : index
    %c0_0 = arith.constant 0 : index
    %0 = vector.load %arg0[%c0, %c0_0] : memref<16x16xf32, #tpu.memory_space<vmem>>, vector<16x16xf32>
    %c0_1 = arith.constant 0 : index
    %c0_2 = arith.constant 0 : index
    %1 = vector.load %arg2[%c0_1, %c0_2] : memref<16x16xf32, #tpu.memory_space<vmem>>, vector<16x16xf32>
    %c0_3 = arith.constant 0 : index
    %c0_4 = arith.constant 0 : index
    %2 = vector.load %arg1[%c0_3, %c0_4] : memref<16x16xf32, #tpu.memory_space<vmem>>, vector<16x16xf32>
    %3 = arith.mulf %2, %2 : vector<16x16xf32>
    %cst = arith.constant dense<0.000000e+00> : vector<16xf32>
    %4 = vector.multi_reduction <add>, %3, %cst [1] : vector<16x16xf32> to vector<16xf32>
    %5 = vector.shape_cast %4 : vector<16xf32> to vector<16x1xf32>
    %cst_5 = arith.constant dense<0.000000e+00> : vector<16x16xf32>
    %6 = tpu.matmul %2, %2, %cst_5 {dimension_numbers = #tpu.dot_dimension_numbers<[1], [1], [0], [0], [0, 0, 1, 0], [], []>} : vector<16x16xf32>, vector<16x16xf32>, vector<16x16xf32> -> vector<16x16xf32>
    %7 = tpu.transpose %5, [1, 0] : vector<16x1xf32> -> vector<1x16xf32>
    %8 = vector.broadcast %5 : vector<16x1xf32> to vector<16x16xf32>
    %9 = vector.broadcast %7 : vector<1x16xf32> to vector<16x16xf32>
    %10 = arith.addf %8, %9 : vector<16x16xf32>
    %cst_6 = arith.constant 2.000000e+00 : f32
    %11 = vector.broadcast %cst_6 : f32 to vector<16x16xf32>
    %12 = arith.mulf %11, %6 : vector<16x16xf32>
    %13 = arith.subf %10, %12 : vector<16x16xf32>
    %cst_7 = arith.constant 0.000000e+00 : f32
    %14 = vector.broadcast %cst_7 : f32 to vector<16x16xf32>
    %15 = arith.maximumf %13, %14 : vector<16x16xf32>
    %16 = vector.shape_cast %15 : vector<16x16xf32> to vector<1x16x16xf32>
    %cst_8 = arith.constant dense<0.000000e+00> : vector<1xf32>
    %17 = vector.multi_reduction <add>, %16, %cst_8 [1, 2] : vector<1x16x16xf32> to vector<1xf32>
    %18 = vector.shape_cast %17 : vector<1xf32> to vector<1x1x1xf32>
    %19 = vector.extract %18[0, 0, 0] : f32 from vector<1x1x1xf32>
    %20 = arith.mulf %0, %0 : vector<16x16xf32>
    %cst_9 = arith.constant dense<0.000000e+00> : vector<16xf32>
    %21 = vector.multi_reduction <add>, %20, %cst_9 [1] : vector<16x16xf32> to vector<16xf32>
    %22 = vector.shape_cast %21 : vector<16xf32> to vector<16x1xf32>
    %cst_10 = arith.constant dense<0.000000e+00> : vector<16x16xf32>
    %23 = tpu.matmul %0, %0, %cst_10 {dimension_numbers = #tpu.dot_dimension_numbers<[1], [1], [0], [0], [0, 0, 1, 0], [], []>} : vector<16x16xf32>, vector<16x16xf32>, vector<16x16xf32> -> vector<16x16xf32>
    %cst_11 = arith.constant dense<0.000000e+00> : vector<16x16xf32>
    %24 = tpu.matmul %0, %2, %cst_11 {dimension_numbers = #tpu.dot_dimension_numbers<[1], [1], [0], [0], [0, 0, 1, 0], [], []>} : vector<16x16xf32>, vector<16x16xf32>, vector<16x16xf32> -> vector<16x16xf32>
    %cst_12 = arith.constant dense<0.000000e+00> : vector<16x16xf32>
    %25 = tpu.matmul %2, %0, %cst_12 {dimension_numbers = #tpu.dot_dimension_numbers<[1], [1], [0], [0], [0, 0, 1, 0], [], []>} : vector<16x16xf32>, vector<16x16xf32>, vector<16x16xf32> -> vector<16x16xf32>
    %26 = tpu.transpose %22, [1, 0] : vector<16x1xf32> -> vector<1x16xf32>
    %27 = vector.broadcast %22 : vector<16x1xf32> to vector<16x16xf32>
    %28 = vector.broadcast %26 : vector<1x16xf32> to vector<16x16xf32>
    %29 = arith.addf %27, %28 : vector<16x16xf32>
    %cst_13 = arith.constant 2.000000e+00 : f32
    %30 = vector.broadcast %cst_13 : f32 to vector<16x16xf32>
    %31 = arith.mulf %30, %23 : vector<16x16xf32>
    %32 = arith.subf %29, %31 : vector<16x16xf32>
    %cst_14 = arith.constant 0.000000e+00 : f32
    %33 = vector.broadcast %cst_14 : f32 to vector<16x16xf32>
    %34 = arith.maximumf %32, %33 : vector<16x16xf32>
    %35 = tpu.transpose %5, [1, 0] : vector<16x1xf32> -> vector<1x16xf32>
    %36 = vector.broadcast %22 : vector<16x1xf32> to vector<16x16xf32>
    %37 = vector.broadcast %35 : vector<1x16xf32> to vector<16x16xf32>
    %38 = arith.addf %36, %37 : vector<16x16xf32>
    %cst_15 = arith.constant 2.000000e+00 : f32
    %39 = vector.broadcast %cst_15 : f32 to vector<16x16xf32>
    %40 = arith.mulf %39, %24 : vector<16x16xf32>
    %41 = arith.subf %38, %40 : vector<16x16xf32>
    %cst_16 = arith.constant 0.000000e+00 : f32
    %42 = vector.broadcast %cst_16 : f32 to vector<16x16xf32>
    %43 = arith.maximumf %41, %42 : vector<16x16xf32>
    %44 = tpu.transpose %22, [1, 0] : vector<16x1xf32> -> vector<1x16xf32>
    %45 = vector.broadcast %5 : vector<16x1xf32> to vector<16x16xf32>
    %46 = vector.broadcast %44 : vector<1x16xf32> to vector<16x16xf32>
    %47 = arith.addf %45, %46 : vector<16x16xf32>
    %cst_17 = arith.constant 2.000000e+00 : f32
    %48 = vector.broadcast %cst_17 : f32 to vector<16x16xf32>
    %49 = arith.mulf %48, %25 : vector<16x16xf32>
    %50 = arith.subf %47, %49 : vector<16x16xf32>
    %cst_18 = arith.constant 0.000000e+00 : f32
    %51 = vector.broadcast %cst_18 : f32 to vector<16x16xf32>
    %52 = arith.maximumf %50, %51 : vector<16x16xf32>
    %53 = vector.shape_cast %34 : vector<16x16xf32> to vector<1x16x16xf32>
    %cst_19 = arith.constant dense<0.000000e+00> : vector<1xf32>
    %54 = vector.multi_reduction <add>, %53, %cst_19 [1, 2] : vector<1x16x16xf32> to vector<1xf32>
    %55 = vector.shape_cast %54 : vector<1xf32> to vector<1x1x1xf32>
    %56 = vector.extract %55[0, 0, 0] : f32 from vector<1x1x1xf32>
    %57 = vector.shape_cast %43 : vector<16x16xf32> to vector<1x16x16xf32>
    %cst_20 = arith.constant dense<0.000000e+00> : vector<1xf32>
    %58 = vector.multi_reduction <add>, %57, %cst_20 [1, 2] : vector<1x16x16xf32> to vector<1xf32>
    %59 = vector.shape_cast %58 : vector<1xf32> to vector<1x1x1xf32>
    %60 = vector.extract %59[0, 0, 0] : f32 from vector<1x1x1xf32>
    %61 = arith.addf %56, %60 : f32
    %62 = vector.shape_cast %52 : vector<16x16xf32> to vector<1x16x16xf32>
    %cst_21 = arith.constant dense<0.000000e+00> : vector<1xf32>
    %63 = vector.multi_reduction <add>, %62, %cst_21 [1, 2] : vector<1x16x16xf32> to vector<1xf32>
    %64 = vector.shape_cast %63 : vector<1xf32> to vector<1x1x1xf32>
    %65 = vector.extract %64[0, 0, 0] : f32 from vector<1x1x1xf32>
    %66 = arith.addf %61, %65 : f32
    %67 = arith.addf %66, %19 : f32
    %cst_22 = arith.constant 9.920000e+02 : f32
    %68 = arith.divf %67, %cst_22 : f32
    %cst_23 = arith.constant 4.000000e+00 : f32
    %69 = arith.divf %68, %cst_23 : f32
    %cst_24 = arith.constant -1.000000e+00 : f32
    %70 = arith.divf %cst_24, %69 : f32
    %71 = vector.broadcast %70 : f32 to vector<16x16xf32>
    %72 = arith.mulf %34, %71 : vector<16x16xf32>
    %73 = math.exp %72 : vector<16x16xf32>
    %cst_25 = arith.constant 5.000000e-01 : f32
    %74 = vector.broadcast %cst_25 : f32 to vector<16x16xf32>
    %75 = arith.mulf %72, %74 : vector<16x16xf32>
    %76 = math.exp %75 : vector<16x16xf32>
    %77 = arith.addf %73, %76 : vector<16x16xf32>
    %cst_26 = arith.constant 2.500000e-01 : f32
    %78 = vector.broadcast %cst_26 : f32 to vector<16x16xf32>
    %79 = arith.mulf %72, %78 : vector<16x16xf32>
    %80 = math.exp %79 : vector<16x16xf32>
    %81 = arith.addf %77, %80 : vector<16x16xf32>
    %cst_27 = arith.constant 1.250000e-01 : f32
    %82 = vector.broadcast %cst_27 : f32 to vector<16x16xf32>
    %83 = arith.mulf %72, %82 : vector<16x16xf32>
    %84 = math.exp %83 : vector<16x16xf32>
    %85 = arith.addf %81, %84 : vector<16x16xf32>
    %cst_28 = arith.constant 6.250000e-02 : f32
    %86 = vector.broadcast %cst_28 : f32 to vector<16x16xf32>
    %87 = arith.mulf %72, %86 : vector<16x16xf32>
    %88 = math.exp %87 : vector<16x16xf32>
    %89 = arith.addf %85, %88 : vector<16x16xf32>
    %90 = vector.broadcast %70 : f32 to vector<16x16xf32>
    %91 = arith.mulf %43, %90 : vector<16x16xf32>
    %92 = math.exp %91 : vector<16x16xf32>
    %cst_29 = arith.constant 5.000000e-01 : f32
    %93 = vector.broadcast %cst_29 : f32 to vector<16x16xf32>
    %94 = arith.mulf %91, %93 : vector<16x16xf32>
    %95 = math.exp %94 : vector<16x16xf32>
    %96 = arith.addf %92, %95 : vector<16x16xf32>
    %cst_30 = arith.constant 2.500000e-01 : f32
    %97 = vector.broadcast %cst_30 : f32 to vector<16x16xf32>
    %98 = arith.mulf %91, %97 : vector<16x16xf32>
    %99 = math.exp %98 : vector<16x16xf32>
    %100 = arith.addf %96, %99 : vector<16x16xf32>
    %cst_31 = arith.constant 1.250000e-01 : f32
    %101 = vector.broadcast %cst_31 : f32 to vector<16x16xf32>
    %102 = arith.mulf %91, %101 : vector<16x16xf32>
    %103 = math.exp %102 : vector<16x16xf32>
    %104 = arith.addf %100, %103 : vector<16x16xf32>
    %cst_32 = arith.constant 6.250000e-02 : f32
    %105 = vector.broadcast %cst_32 : f32 to vector<16x16xf32>
    %106 = arith.mulf %91, %105 : vector<16x16xf32>
    %107 = math.exp %106 : vector<16x16xf32>
    %108 = arith.addf %104, %107 : vector<16x16xf32>
    %109 = vector.broadcast %70 : f32 to vector<16x16xf32>
    %110 = arith.mulf %52, %109 : vector<16x16xf32>
    %111 = math.exp %110 : vector<16x16xf32>
    %cst_33 = arith.constant 5.000000e-01 : f32
    %112 = vector.broadcast %cst_33 : f32 to vector<16x16xf32>
    %113 = arith.mulf %110, %112 : vector<16x16xf32>
    %114 = math.exp %113 : vector<16x16xf32>
    %115 = arith.addf %111, %114 : vector<16x16xf32>
    %cst_34 = arith.constant 2.500000e-01 : f32
    %116 = vector.broadcast %cst_34 : f32 to vector<16x16xf32>
    %117 = arith.mulf %110, %116 : vector<16x16xf32>
    %118 = math.exp %117 : vector<16x16xf32>
    %119 = arith.addf %115, %118 : vector<16x16xf32>
    %cst_35 = arith.constant 1.250000e-01 : f32
    %120 = vector.broadcast %cst_35 : f32 to vector<16x16xf32>
    %121 = arith.mulf %110, %120 : vector<16x16xf32>
    %122 = math.exp %121 : vector<16x16xf32>
    %123 = arith.addf %119, %122 : vector<16x16xf32>
    %cst_36 = arith.constant 6.250000e-02 : f32
    %124 = vector.broadcast %cst_36 : f32 to vector<16x16xf32>
    %125 = arith.mulf %110, %124 : vector<16x16xf32>
    %126 = math.exp %125 : vector<16x16xf32>
    %127 = arith.addf %123, %126 : vector<16x16xf32>
    %128 = vector.broadcast %70 : f32 to vector<16x16xf32>
    %129 = arith.mulf %15, %128 : vector<16x16xf32>
    %130 = math.exp %129 : vector<16x16xf32>
    %cst_37 = arith.constant 5.000000e-01 : f32
    %131 = vector.broadcast %cst_37 : f32 to vector<16x16xf32>
    %132 = arith.mulf %129, %131 : vector<16x16xf32>
    %133 = math.exp %132 : vector<16x16xf32>
    %134 = arith.addf %130, %133 : vector<16x16xf32>
    %cst_38 = arith.constant 2.500000e-01 : f32
    %135 = vector.broadcast %cst_38 : f32 to vector<16x16xf32>
    %136 = arith.mulf %129, %135 : vector<16x16xf32>
    %137 = math.exp %136 : vector<16x16xf32>
    %138 = arith.addf %134, %137 : vector<16x16xf32>
    %cst_39 = arith.constant 1.250000e-01 : f32
    %139 = vector.broadcast %cst_39 : f32 to vector<16x16xf32>
    %140 = arith.mulf %129, %139 : vector<16x16xf32>
    %141 = math.exp %140 : vector<16x16xf32>
    %142 = arith.addf %138, %141 : vector<16x16xf32>
    %cst_40 = arith.constant 6.250000e-02 : f32
    %143 = vector.broadcast %cst_40 : f32 to vector<16x16xf32>
    %144 = arith.mulf %129, %143 : vector<16x16xf32>
    %145 = math.exp %144 : vector<16x16xf32>
    %146 = arith.addf %142, %145 : vector<16x16xf32>
    %147 = arith.mulf %1, %1 : vector<16x16xf32>
    %cst_41 = arith.constant dense<0.000000e+00> : vector<16xf32>
    %148 = vector.multi_reduction <add>, %147, %cst_41 [1] : vector<16x16xf32> to vector<16xf32>
    %149 = vector.shape_cast %148 : vector<16xf32> to vector<16x1xf32>
    %cst_42 = arith.constant dense<0.000000e+00> : vector<16x16xf32>
    %150 = tpu.matmul %1, %1, %cst_42 {dimension_numbers = #tpu.dot_dimension_numbers<[1], [1], [0], [0], [0, 0, 1, 0], [], []>} : vector<16x16xf32>, vector<16x16xf32>, vector<16x16xf32> -> vector<16x16xf32>
    %cst_43 = arith.constant dense<0.000000e+00> : vector<16x16xf32>
    %151 = tpu.matmul %1, %2, %cst_43 {dimension_numbers = #tpu.dot_dimension_numbers<[1], [1], [0], [0], [0, 0, 1, 0], [], []>} : vector<16x16xf32>, vector<16x16xf32>, vector<16x16xf32> -> vector<16x16xf32>
    %cst_44 = arith.constant dense<0.000000e+00> : vector<16x16xf32>
    %152 = tpu.matmul %2, %1, %cst_44 {dimension_numbers = #tpu.dot_dimension_numbers<[1], [1], [0], [0], [0, 0, 1, 0], [], []>} : vector<16x16xf32>, vector<16x16xf32>, vector<16x16xf32> -> vector<16x16xf32>
    %153 = tpu.transpose %149, [1, 0] : vector<16x1xf32> -> vector<1x16xf32>
    %154 = vector.broadcast %149 : vector<16x1xf32> to vector<16x16xf32>
    %155 = vector.broadcast %153 : vector<1x16xf32> to vector<16x16xf32>
    %156 = arith.addf %154, %155 : vector<16x16xf32>
    %cst_45 = arith.constant 2.000000e+00 : f32
    %157 = vector.broadcast %cst_45 : f32 to vector<16x16xf32>
    %158 = arith.mulf %157, %150 : vector<16x16xf32>
    %159 = arith.subf %156, %158 : vector<16x16xf32>
    %cst_46 = arith.constant 0.000000e+00 : f32
    %160 = vector.broadcast %cst_46 : f32 to vector<16x16xf32>
    %161 = arith.maximumf %159, %160 : vector<16x16xf32>
    %162 = tpu.transpose %5, [1, 0] : vector<16x1xf32> -> vector<1x16xf32>
    %163 = vector.broadcast %149 : vector<16x1xf32> to vector<16x16xf32>
    %164 = vector.broadcast %162 : vector<1x16xf32> to vector<16x16xf32>
    %165 = arith.addf %163, %164 : vector<16x16xf32>
    %cst_47 = arith.constant 2.000000e+00 : f32
    %166 = vector.broadcast %cst_47 : f32 to vector<16x16xf32>
    %167 = arith.mulf %166, %151 : vector<16x16xf32>
    %168 = arith.subf %165, %167 : vector<16x16xf32>
    %cst_48 = arith.constant 0.000000e+00 : f32
    %169 = vector.broadcast %cst_48 : f32 to vector<16x16xf32>
    %170 = arith.maximumf %168, %169 : vector<16x16xf32>
    %171 = tpu.transpose %149, [1, 0] : vector<16x1xf32> -> vector<1x16xf32>
    %172 = vector.broadcast %5 : vector<16x1xf32> to vector<16x16xf32>
    %173 = vector.broadcast %171 : vector<1x16xf32> to vector<16x16xf32>
    %174 = arith.addf %172, %173 : vector<16x16xf32>
    %cst_49 = arith.constant 2.000000e+00 : f32
    %175 = vector.broadcast %cst_49 : f32 to vector<16x16xf32>
    %176 = arith.mulf %175, %152 : vector<16x16xf32>
    %177 = arith.subf %174, %176 : vector<16x16xf32>
    %cst_50 = arith.constant 0.000000e+00 : f32
    %178 = vector.broadcast %cst_50 : f32 to vector<16x16xf32>
    %179 = arith.maximumf %177, %178 : vector<16x16xf32>
    %180 = vector.shape_cast %161 : vector<16x16xf32> to vector<1x16x16xf32>
    %cst_51 = arith.constant dense<0.000000e+00> : vector<1xf32>
    %181 = vector.multi_reduction <add>, %180, %cst_51 [1, 2] : vector<1x16x16xf32> to vector<1xf32>
    %182 = vector.shape_cast %181 : vector<1xf32> to vector<1x1x1xf32>
    %183 = vector.extract %182[0, 0, 0] : f32 from vector<1x1x1xf32>
    %184 = vector.shape_cast %170 : vector<16x16xf32> to vector<1x16x16xf32>
    %cst_52 = arith.constant dense<0.000000e+00> : vector<1xf32>
    %185 = vector.multi_reduction <add>, %184, %cst_52 [1, 2] : vector<1x16x16xf32> to vector<1xf32>
    %186 = vector.shape_cast %185 : vector<1xf32> to vector<1x1x1xf32>
    %187 = vector.extract %186[0, 0, 0] : f32 from vector<1x1x1xf32>
    %188 = arith.addf %183, %187 : f32
    %189 = vector.shape_cast %179 : vector<16x16xf32> to vector<1x16x16xf32>
    %cst_53 = arith.constant dense<0.000000e+00> : vector<1xf32>
    %190 = vector.multi_reduction <add>, %189, %cst_53 [1, 2] : vector<1x16x16xf32> to vector<1xf32>
    %191 = vector.shape_cast %190 : vector<1xf32> to vector<1x1x1xf32>
    %192 = vector.extract %191[0, 0, 0] : f32 from vector<1x1x1xf32>
    %193 = arith.addf %188, %192 : f32
    %194 = arith.addf %193, %19 : f32
    %cst_54 = arith.constant 9.920000e+02 : f32
    %195 = arith.divf %194, %cst_54 : f32
    %cst_55 = arith.constant 4.000000e+00 : f32
    %196 = arith.divf %195, %cst_55 : f32
    %cst_56 = arith.constant -1.000000e+00 : f32
    %197 = arith.divf %cst_56, %196 : f32
    %198 = vector.broadcast %197 : f32 to vector<16x16xf32>
    %199 = arith.mulf %161, %198 : vector<16x16xf32>
    %200 = math.exp %199 : vector<16x16xf32>
    %cst_57 = arith.constant 5.000000e-01 : f32
    %201 = vector.broadcast %cst_57 : f32 to vector<16x16xf32>
    %202 = arith.mulf %199, %201 : vector<16x16xf32>
    %203 = math.exp %202 : vector<16x16xf32>
    %204 = arith.addf %200, %203 : vector<16x16xf32>
    %cst_58 = arith.constant 2.500000e-01 : f32
    %205 = vector.broadcast %cst_58 : f32 to vector<16x16xf32>
    %206 = arith.mulf %199, %205 : vector<16x16xf32>
    %207 = math.exp %206 : vector<16x16xf32>
    %208 = arith.addf %204, %207 : vector<16x16xf32>
    %cst_59 = arith.constant 1.250000e-01 : f32
    %209 = vector.broadcast %cst_59 : f32 to vector<16x16xf32>
    %210 = arith.mulf %199, %209 : vector<16x16xf32>
    %211 = math.exp %210 : vector<16x16xf32>
    %212 = arith.addf %208, %211 : vector<16x16xf32>
    %cst_60 = arith.constant 6.250000e-02 : f32
    %213 = vector.broadcast %cst_60 : f32 to vector<16x16xf32>
    %214 = arith.mulf %199, %213 : vector<16x16xf32>
    %215 = math.exp %214 : vector<16x16xf32>
    %216 = arith.addf %212, %215 : vector<16x16xf32>
    %217 = vector.broadcast %197 : f32 to vector<16x16xf32>
    %218 = arith.mulf %170, %217 : vector<16x16xf32>
    %219 = math.exp %218 : vector<16x16xf32>
    %cst_61 = arith.constant 5.000000e-01 : f32
    %220 = vector.broadcast %cst_61 : f32 to vector<16x16xf32>
    %221 = arith.mulf %218, %220 : vector<16x16xf32>
    %222 = math.exp %221 : vector<16x16xf32>
    %223 = arith.addf %219, %222 : vector<16x16xf32>
    %cst_62 = arith.constant 2.500000e-01 : f32
    %224 = vector.broadcast %cst_62 : f32 to vector<16x16xf32>
    %225 = arith.mulf %218, %224 : vector<16x16xf32>
    %226 = math.exp %225 : vector<16x16xf32>
    %227 = arith.addf %223, %226 : vector<16x16xf32>
    %cst_63 = arith.constant 1.250000e-01 : f32
    %228 = vector.broadcast %cst_63 : f32 to vector<16x16xf32>
    %229 = arith.mulf %218, %228 : vector<16x16xf32>
    %230 = math.exp %229 : vector<16x16xf32>
    %231 = arith.addf %227, %230 : vector<16x16xf32>
    %cst_64 = arith.constant 6.250000e-02 : f32
    %232 = vector.broadcast %cst_64 : f32 to vector<16x16xf32>
    %233 = arith.mulf %218, %232 : vector<16x16xf32>
    %234 = math.exp %233 : vector<16x16xf32>
    %235 = arith.addf %231, %234 : vector<16x16xf32>
    %236 = vector.broadcast %197 : f32 to vector<16x16xf32>
    %237 = arith.mulf %179, %236 : vector<16x16xf32>
    %238 = math.exp %237 : vector<16x16xf32>
    %cst_65 = arith.constant 5.000000e-01 : f32
    %239 = vector.broadcast %cst_65 : f32 to vector<16x16xf32>
    %240 = arith.mulf %237, %239 : vector<16x16xf32>
    %241 = math.exp %240 : vector<16x16xf32>
    %242 = arith.addf %238, %241 : vector<16x16xf32>
    %cst_66 = arith.constant 2.500000e-01 : f32
    %243 = vector.broadcast %cst_66 : f32 to vector<16x16xf32>
    %244 = arith.mulf %237, %243 : vector<16x16xf32>
    %245 = math.exp %244 : vector<16x16xf32>
    %246 = arith.addf %242, %245 : vector<16x16xf32>
    %cst_67 = arith.constant 1.250000e-01 : f32
    %247 = vector.broadcast %cst_67 : f32 to vector<16x16xf32>
    %248 = arith.mulf %237, %247 : vector<16x16xf32>
    %249 = math.exp %248 : vector<16x16xf32>
    %250 = arith.addf %246, %249 : vector<16x16xf32>
    %cst_68 = arith.constant 6.250000e-02 : f32
    %251 = vector.broadcast %cst_68 : f32 to vector<16x16xf32>
    %252 = arith.mulf %237, %251 : vector<16x16xf32>
    %253 = math.exp %252 : vector<16x16xf32>
    %254 = arith.addf %250, %253 : vector<16x16xf32>
    %255 = vector.broadcast %197 : f32 to vector<16x16xf32>
    %256 = arith.mulf %15, %255 : vector<16x16xf32>
    %257 = math.exp %256 : vector<16x16xf32>
    %cst_69 = arith.constant 5.000000e-01 : f32
    %258 = vector.broadcast %cst_69 : f32 to vector<16x16xf32>
    %259 = arith.mulf %256, %258 : vector<16x16xf32>
    %260 = math.exp %259 : vector<16x16xf32>
    %261 = arith.addf %257, %260 : vector<16x16xf32>
    %cst_70 = arith.constant 2.500000e-01 : f32
    %262 = vector.broadcast %cst_70 : f32 to vector<16x16xf32>
    %263 = arith.mulf %256, %262 : vector<16x16xf32>
    %264 = math.exp %263 : vector<16x16xf32>
    %265 = arith.addf %261, %264 : vector<16x16xf32>
    %cst_71 = arith.constant 1.250000e-01 : f32
    %266 = vector.broadcast %cst_71 : f32 to vector<16x16xf32>
    %267 = arith.mulf %256, %266 : vector<16x16xf32>
    %268 = math.exp %267 : vector<16x16xf32>
    %269 = arith.addf %265, %268 : vector<16x16xf32>
    %cst_72 = arith.constant 6.250000e-02 : f32
    %270 = vector.broadcast %cst_72 : f32 to vector<16x16xf32>
    %271 = arith.mulf %256, %270 : vector<16x16xf32>
    %272 = math.exp %271 : vector<16x16xf32>
    %273 = arith.addf %269, %272 : vector<16x16xf32>
    %cst_73 = arith.constant 1.000000e-01 : f32
    %274 = vector.broadcast %cst_73 : f32 to vector<16x16xf32>
    %275 = arith.mulf %274, %89 : vector<16x16xf32>
    %cst_74 = arith.constant 1.000000e-01 : f32
    %276 = vector.broadcast %cst_74 : f32 to vector<16x16xf32>
    %277 = arith.subf %276, %216 : vector<16x16xf32>
    %cst_75 = arith.constant 0.000000e+00 : f32
    %278 = vector.broadcast %cst_75 : f32 to vector<16x16xf32>
    %279 = arith.maximumf %278, %277 : vector<16x16xf32>
    %cst_76 = arith.constant 0.00999999977 : f32
    %280 = vector.broadcast %cst_76 : f32 to vector<16x16xf32>
    %281 = arith.mulf %280, %279 : vector<16x16xf32>
    %282 = arith.addf %275, %281 : vector<16x16xf32>
    %cst_77 = arith.constant 1.000000e-01 : f32
    %283 = vector.broadcast %cst_77 : f32 to vector<16x16xf32>
    %284 = arith.mulf %283, %108 : vector<16x16xf32>
    %cst_78 = arith.constant 1.000000e-01 : f32
    %285 = vector.broadcast %cst_78 : f32 to vector<16x16xf32>
    %286 = arith.subf %285, %235 : vector<16x16xf32>
    %cst_79 = arith.constant 0.000000e+00 : f32
    %287 = vector.broadcast %cst_79 : f32 to vector<16x16xf32>
    %288 = arith.maximumf %287, %286 : vector<16x16xf32>
    %cst_80 = arith.constant 0.00999999977 : f32
    %289 = vector.broadcast %cst_80 : f32 to vector<16x16xf32>
    %290 = arith.mulf %289, %288 : vector<16x16xf32>
    %291 = arith.addf %284, %290 : vector<16x16xf32>
    %cst_81 = arith.constant 1.000000e-01 : f32
    %292 = vector.broadcast %cst_81 : f32 to vector<16x16xf32>
    %293 = arith.mulf %292, %127 : vector<16x16xf32>
    %cst_82 = arith.constant 1.000000e-01 : f32
    %294 = vector.broadcast %cst_82 : f32 to vector<16x16xf32>
    %295 = arith.subf %294, %254 : vector<16x16xf32>
    %cst_83 = arith.constant 0.000000e+00 : f32
    %296 = vector.broadcast %cst_83 : f32 to vector<16x16xf32>
    %297 = arith.maximumf %296, %295 : vector<16x16xf32>
    %cst_84 = arith.constant 0.00999999977 : f32
    %298 = vector.broadcast %cst_84 : f32 to vector<16x16xf32>
    %299 = arith.mulf %298, %297 : vector<16x16xf32>
    %300 = arith.addf %293, %299 : vector<16x16xf32>
    %cst_85 = arith.constant 1.000000e-01 : f32
    %301 = vector.broadcast %cst_85 : f32 to vector<16x16xf32>
    %302 = arith.mulf %301, %146 : vector<16x16xf32>
    %cst_86 = arith.constant 1.000000e-01 : f32
    %303 = vector.broadcast %cst_86 : f32 to vector<16x16xf32>
    %304 = arith.subf %303, %273 : vector<16x16xf32>
    %cst_87 = arith.constant 0.000000e+00 : f32
    %305 = vector.broadcast %cst_87 : f32 to vector<16x16xf32>
    %306 = arith.maximumf %305, %304 : vector<16x16xf32>
    %cst_88 = arith.constant 0.00999999977 : f32
    %307 = vector.broadcast %cst_88 : f32 to vector<16x16xf32>
    %308 = arith.mulf %307, %306 : vector<16x16xf32>
    %309 = arith.addf %302, %308 : vector<16x16xf32>
    %c0_89 = arith.constant 0 : index
    %c0_90 = arith.constant 0 : index
    %310 = vector.load %arg3[%c0_89, %c0_90] : memref<32x32xf32, #tpu.memory_space<vmem>>, vector<16x16xf32>
    tpu.vector_store %arg3[%c0_89, %c0_90], %282 {strides = array<i32>} : memref<32x32xf32, #tpu.memory_space<vmem>>, vector<16x16xf32>,
    %c0_91 = arith.constant 0 : index
    %c16 = arith.constant 16 : index
    %311 = vector.load %arg3[%c0_91, %c16] : memref<32x32xf32, #tpu.memory_space<vmem>>, vector<16x16xf32>
    tpu.vector_store %arg3[%c0_91, %c16], %291 {strides = array<i32>} : memref<32x32xf32, #tpu.memory_space<vmem>>, vector<16x16xf32>,
    %c16_92 = arith.constant 16 : index
    %c0_93 = arith.constant 0 : index
    %312 = vector.load %arg3[%c16_92, %c0_93] : memref<32x32xf32, #tpu.memory_space<vmem>>, vector<16x16xf32>
    tpu.vector_store %arg3[%c16_92, %c0_93], %300 {strides = array<i32>} : memref<32x32xf32, #tpu.memory_space<vmem>>, vector<16x16xf32>,
    %c16_94 = arith.constant 16 : index
    %c16_95 = arith.constant 16 : index
    %313 = vector.load %arg3[%c16_94, %c16_95] : memref<32x32xf32, #tpu.memory_space<vmem>>, vector<16x16xf32>
    tpu.vector_store %arg3[%c16_94, %c16_95], %309 {strides = array<i32>} : memref<32x32xf32, #tpu.memory_space<vmem>>, vector<16x16xf32>,
    return
  }
}

</mosaic_0001>

<llo_original>
// kernel: tpu_custom_call.1
$region0: #{tpu_custom_call.1}
  #allocation0 [shape = 'u32[]', space=smem, size = 0x4, offset = 0x4, fixed_abs, tag = 'smem constant byte address 0x4 - core index']
  #allocation1 [shape = 'u32[144,128]{1,0:T(1,128)}', space=vmem, size = 0x12000, scoped, tag = 'internal scratch']
  %s0 = inlined_call_operand.hbm [shape: f32[16,16], index: 0, kind: input, shape index: {}]
  %s1 = inlined_call_operand.hbm [shape: f32[16,16], index: 1, kind: input, shape index: {}]
  %s2 = inlined_call_operand.hbm [shape: f32[16,16], index: 2, kind: input, shape index: {}]
  %s3 = inlined_call_operand.hbm [shape: f32[32,32], index: 3, kind: output, shape index: {}]
  %s4 = sld [smem:[#allocation0]]
  $region34: #{tpu_custom_call.1} parent=0
    _
  %s6 = ssub.s32 1, %s4
  %s7 = scalar_select 0, %s6, %s4
  $region1: #{tpu_custom_call.1} parent=0
    #allocation2 [shape = 'u8[8192]{0}', space=vmem, size = 0x2000, scoped, tag = 'input window, operand 0, single buffered']
    #allocation3 [shape = 's32[1]{0}', space=sflag, size = 0x4, scoped, tag = 'scoped memory for tpu_custom_call.1']
    #allocation4 [shape = 's32[1]{0}', space=sflag, size = 0x4, scoped, tag = 'scoped memory for tpu_custom_call.1']
    #allocation5 [shape = 'u8[8192]{0}', space=vmem, size = 0x2000, scoped, tag = 'input window, operand 1, single buffered']
    #allocation6 [shape = 's32[1]{0}', space=sflag, size = 0x4, scoped, tag = 'scoped memory for tpu_custom_call.1']
    #allocation7 [shape = 'u8[8192]{0}', space=vmem, size = 0x2000, scoped, tag = 'input window, operand 2, single buffered']
    #allocation8 [shape = 'u8[16384]{0}', space=vmem, size = 0x4000, scoped, tag = 'output window, operand 0, single buffered']
    %8 = vsyncpa [#allocation3], 0
    %9 = vsyncpa [#allocation6], 0
    %10 = vsyncpa [#allocation4], 0
    // Predicated region
    $region2: #{tpu_custom_call.1} parent=1 // pred_check
      _
    $region3: #{tpu_custom_call.1} parent=1 // pred_check_branch
      %12 = sbr.rel (0) target = $region5
    $region4: #{tpu_custom_call.1} parent=1 // pred_region
      %s14 = ssub.s32 256, 256
      %15 = vsyncadd [#allocation3], %s14
      %s16 = sshll.u32 [#allocation2], 4
      %s17 = int_to_ptr.vmem [resolvable:$true] %s16
      %22 = dma.hbm_to_vmem [thread:$0]  %s0, 256, %s17, [#allocation3], 128, 128, 8
    $region5: #{tpu_custom_call.1} parent=1 // pred_fallthru
      _
    // Predicated region
    $region6: #{tpu_custom_call.1} parent=1 // pred_check
      _
    $region7: #{tpu_custom_call.1} parent=1 // pred_check_branch
      %24 = sbr.rel (0) target = $region9
    $region8: #{tpu_custom_call.1} parent=1 // pred_region
      %s26 = ssub.s32 256, 256
      %27 = vsyncadd [#allocation6], %s26
      %s28 = sshll.u32 [#allocation5], 4
      %s29 = int_to_ptr.vmem [resolvable:$true] %s28
      %34 = dma.hbm_to_vmem [thread:$0]  %s1, 256, %s29, [#allocation6], 128, 128, 8
    $region9: #{tpu_custom_call.1} parent=1 // pred_fallthru
      _
    // Predicated region
    $region10: #{tpu_custom_call.1} parent=1 // pred_check
      _
    $region11: #{tpu_custom_call.1} parent=1 // pred_check_branch
      %36 = sbr.rel (0) target = $region13
    $region12: #{tpu_custom_call.1} parent=1 // pred_region
      %s38 = ssub.s32 256, 256
      %39 = vsyncadd [#allocation6], %s38
      %s40 = sshll.u32 [#allocation7], 4
      %s41 = int_to_ptr.vmem [resolvable:$true] %s40
      %46 = dma.hbm_to_vmem [thread:$0]  %s2, 256, %s41, [#allocation6], 128, 128, 8
    $region13: #{tpu_custom_call.1} parent=1 // pred_fallthru
      _
    // Predicated region
    $region14: #{tpu_custom_call.1} parent=1 // pred_check
      _
    $region15: #{tpu_custom_call.1} parent=1 // pred_check_branch
      %48 = sbr.rel (0) target = $region17
    $region16: #{tpu_custom_call.1} parent=1 // pred_region
      %49 = dma.done [#allocation3], 256
    $region17: #{tpu_custom_call.1} parent=1 // pred_fallthru
      _
    // Predicated region
    $region18: #{tpu_custom_call.1} parent=1 // pred_check
      _
    $region19: #{tpu_custom_call.1} parent=1 // pred_check_branch
      %51 = sbr.rel (0) target = $region21
    $region20: #{tpu_custom_call.1} parent=1 // pred_region
      %52 = dma.done [#allocation6], 256
    $region21: #{tpu_custom_call.1} parent=1 // pred_fallthru
      _
    // Predicated region
    $region22: #{tpu_custom_call.1} parent=1 // pred_check
      _
    $region23: #{tpu_custom_call.1} parent=1 // pred_check_branch
      %54 = sbr.rel (0) target = $region25
    $region24: #{tpu_custom_call.1} parent=1 // pred_region
      %55 = dma.done [#allocation6], 256
    $region25: #{tpu_custom_call.1} parent=1 // pred_fallthru
      _
    %v56 = vld [vmem:[#allocation2] sm:$0xff]
    %v57 = vld [vmem:[#allocation2 + $0x8] sm:$0xff]
    %v58 = vld [vmem:[#allocation7] sm:$0xff]
    %v59 = vld [vmem:[#allocation7 + $0x8] sm:$0xff]
    %v60 = vld [vmem:[#allocation5] sm:$0xff]
    %v61 = vld [vmem:[#allocation5 + $0x8] sm:$0xff]
    %v62 = vmul.f32 %v60, %v60
    %v63 = vmul.f32 %v61, %v61
    %vm64 = vcmask 130048
    %v65 = vsel %vm64, %v62, 0.0
    %66 = vadd.xlane.f32.xlu0 %v65
    %v67 = vpop.xlane.xlu0 %66
    %v68 = vsel %vm64, %v63, 0.0
    %69 = vadd.xlane.f32.xlu0 %v68
    %v70 = vpop.xlane.xlu0 %69
    %v72 = vsel %vm64, %v60, 0
    %v75 = vsel %vm64, %v61, 0
    %77 = vmatprep.subr.mxu0 0.0
    %78 = vmatpush1.xpose.msra.mxu0 %v72
    %79 = vmatprep.subr.mxu0 0.0
    %80 = vmatpush1.xpose.msra.mxu0 %v75
    %81 = vmatprep.subr.mxu0 0.0
    %82 = vmatpush1.xpose.msra.mxu0 0.0
    %83 = vmatprep.subr.mxu0 0.0
    %84 = vmatpush1.xpose.msra.mxu0 0.0
    %85 = vmatprep.subr.mxu0 0.0
    %86 = vmatpush1.xpose.msra.mxu0 0.0
    %87 = vmatprep.subr.mxu0 0.0
    %88 = vmatpush1.xpose.msra.mxu0 0.0
    %89 = vmatprep.subr.mxu0 0.0
    %90 = vmatpush1.xpose.msra.mxu0 0.0
    %91 = vmatprep.subr.mxu0 0.0
    %92 = vmatpush1.xpose.msra.mxu0 0.0
    %93 = vmatprep.subr.mxu0 0.0
    %94 = vmatpush1.xpose.msra.mxu0 0.0
    %95 = vmatprep.subr.mxu0 0.0
    %96 = vmatpush1.xpose.msra.mxu0 0.0
    %97 = vmatprep.subr.mxu0 0.0
    %98 = vmatpush1.xpose.msra.mxu0 0.0
    %99 = vmatprep.subr.mxu0 0.0
    %100 = vmatpush1.xpose.msra.mxu0 0.0
    %101 = vmatprep.subr.mxu0 0.0
    %102 = vmatpush1.xpose.msra.mxu0 0.0
    %103 = vmatprep.subr.mxu0 0.0
    %104 = vmatpush1.xpose.msra.mxu0 0.0
    %105 = vmatprep.subr.mxu0 0.0
    %106 = vmatpush1.xpose.msra.mxu0 0.0
    %107 = vmatprep.subr.mxu0 0.0
    %108 = vmatpush1.xpose.msra.mxu0 0.0
    %109 = vmatprep.subr.mxu0 0.0
    %110 = vmatpush1.xpose.msra.mxu0 0.0
    %111 = vmatprep.subr.mxu0 0.0
    %112 = vmatpush1.xpose.msra.mxu0 0.0
    %113 = vmatprep.subr.mxu0 0.0
    %114 = vmatpush1.xpose.msra.mxu0 0.0
    %115 = vmatprep.subr.mxu0 0.0
    %116 = vmatpush1.xpose.msra.mxu0 0.0
    %117 = vmatprep.subr.mxu0 0.0
    %118 = vmatpush1.xpose.msra.mxu0 0.0
    %119 = vmatprep.subr.mxu0 0.0
    %120 = vmatpush1.xpose.msra.mxu0 0.0
    %121 = vmatprep.subr.mxu0 0.0
    %122 = vmatpush1.xpose.msra.mxu0 0.0
    %123 = vmatprep.subr.mxu0 0.0
    %124 = vmatpush1.xpose.msra.mxu0 0.0
    %125 = vmatprep.subr.mxu0 0.0
    %126 = vmatpush1.xpose.msra.mxu0 0.0
    %127 = vmatprep.subr.mxu0 0.0
    %128 = vmatpush1.xpose.msra.mxu0 0.0
    %129 = vmatprep.subr.mxu0 0.0
    %130 = vmatpush1.xpose.msra.mxu0 0.0
    %131 = vmatprep.subr.mxu0 0.0
    %132 = vmatpush1.xpose.msra.mxu0 0.0
    %133 = vmatprep.subr.mxu0 0.0
    %134 = vmatpush1.xpose.msra.mxu0 0.0
    %135 = vmatprep.subr.mxu0 0.0
    %136 = vmatpush1.xpose.msra.mxu0 0.0
    %137 = vmatprep.subr.mxu0 0.0
    %138 = vmatpush1.xpose.msra.mxu0 0.0
    %139 = vmatprep.subr.mxu0 0.0
    %140 = vmatpush1.xpose.msra.mxu0 0.0
    %141 = vmatprep.mubr.f32.mxu0 0.0
    %142 = vmatmul.mubr.f32.gmra.mrb[0].mxu0 %v72
    %v143 = vpop.f32.mrb[0].mxu0
    %v144 = vadd.f32 0.0, %v143
    %v145 = vpop.f32.mrb[0].mxu0
    %146 = vmatprep.mubr.f32.mxu0 0.0
    %147 = vmatmul.mubr.f32.gmra.mrb[0].mxu0 %v75
    %v148 = vpop.f32.mrb[0].mxu0
    %v149 = vadd.f32 0.0, %v148
    %v150 = vpop.f32.mrb[0].mxu0
    %151 = vdwg.mxu0
    %152 = vxpose.xlu0.b32.start [1/16] %v67, 128
    %153 = vxpose.xlu0.b32.cont [2/16] %v70, 128
    %154 = vxpose.xlu0.b32.cont [3/16] 0.0, 128
    %155 = vxpose.xlu0.b32.cont [4/16] 0.0, 128
    %156 = vxpose.xlu0.b32.cont [5/16] 0.0, 128
    %157 = vxpose.xlu0.b32.cont [6/16] 0.0, 128
    %158 = vxpose.xlu0.b32.cont [7/16] 0.0, 128
    %159 = vxpose.xlu0.b32.cont [8/16] 0.0, 128
    %160 = vxpose.xlu0.b32.cont [9/16] 0.0, 128
    %161 = vxpose.xlu0.b32.cont [10/16] 0.0, 128
    %162 = vxpose.xlu0.b32.cont [11/16] 0.0, 128
    %163 = vxpose.xlu0.b32.cont [12/16] 0.0, 128
    %164 = vxpose.xlu0.b32.cont [13/16] 0.0, 128
    %165 = vxpose.xlu0.b32.cont [14/16] 0.0, 128
    %166 = vxpose.xlu0.b32.cont [15/16] 0.0, 128
    %167 = vxpose.xlu0.b32.end [16/16] 0.0, 128
    %v168 = vpop.trf.xlu0
    %v169 = vpop.trf.xlu0
    %v170 = vpop.trf.xlu0
    %v171 = vpop.trf.xlu0
    %v172 = vpop.trf.xlu0
    %v173 = vpop.trf.xlu0
    %v174 = vpop.trf.xlu0
    %v175 = vpop.trf.xlu0
    %v176 = vpop.trf.xlu0
    %v177 = vpop.trf.xlu0
    %v178 = vpop.trf.xlu0
    %v179 = vpop.trf.xlu0
    %v180 = vpop.trf.xlu0
    %v181 = vpop.trf.xlu0
    %v182 = vpop.trf.xlu0
    %v183 = vpop.trf.xlu0
    %v184 = vlaneseq
    %v185 = vshrl.u32 %v184, 7
    %v186 = vsub.s32 0, %v185
    %v187 = vrot.slane %v168, %v186
    %v188 = vadd.f32 %v67, %v187
    %v189 = vadd.f32 %v70, %v187
    %v190 = vmul.f32 %v144, 2.0
    %v191 = vmul.f32 %v149, 2.0
    %v192 = vsub.f32 %v188, %v190
    %v193 = vsub.f32 %v189, %v191
    %v194 = vmax.f32 %v192, 0.0
    %v195 = vmax.f32 %v193, 0.0
    %v196 = vsel %vm64, %v194, 0.0
    %v197 = vsel %vm64, %v195, 0.0
    %v198 = vadd.f32 %v196, %v197
    %199 = vadd.xlane.f32.xlu0 %v198
    %v200 = vpop.xlane.xlu0 %199
    %v201 = vrot.slane %v200, 4
    %v202 = vadd.f32 %v200, %v201
    %v203 = vrot.slane %v202, 2
    %v204 = vadd.f32 %v202, %v203
    %v205 = vrot.slane %v204, 1
    %v206 = vadd.f32 %v204, %v205
    %s207 = vtos %v206
    %v208 = vmul.f32 %v56, %v56
    %v209 = vmul.f32 %v57, %v57
    %v210 = vsel %vm64, %v208, 0.0
    %211 = vadd.xlane.f32.xlu0 %v210
    %v212 = vpop.xlane.xlu0 %211
    %v213 = vsel %vm64, %v209, 0.0
    %214 = vadd.xlane.f32.xlu0 %v213
    %v215 = vpop.xlane.xlu0 %214
    %v217 = vsel %vm64, %v56, 0
    %v220 = vsel %vm64, %v57, 0
    %222 = vmatprep.subr.mxu0 0.0
    %223 = vmatpush1.xpose.msra.mxu0 %v217
    %224 = vmatprep.subr.mxu0 0.0
    %225 = vmatpush1.xpose.msra.mxu0 %v220
    %226 = vmatprep.subr.mxu0 0.0
    %227 = vmatpush1.xpose.msra.mxu0 0.0
    %228 = vmatprep.subr.mxu0 0.0
    %229 = vmatpush1.xpose.msra.mxu0 0.0
    %230 = vmatprep.subr.mxu0 0.0
    %231 = vmatpush1.xpose.msra.mxu0 0.0
    %232 = vmatprep.subr.mxu0 0.0
    %233 = vmatpush1.xpose.msra.mxu0 0.0
    %234 = vmatprep.subr.mxu0 0.0
    %235 = vmatpush1.xpose.msra.mxu0 0.0
    %236 = vmatprep.subr.mxu0 0.0
    %237 = vmatpush1.xpose.msra.mxu0 0.0
    %238 = vmatprep.subr.mxu0 0.0
    %239 = vmatpush1.xpose.msra.mxu0 0.0
    %240 = vmatprep.subr.mxu0 0.0
    %241 = vmatpush1.xpose.msra.mxu0 0.0
    %242 = vmatprep.subr.mxu0 0.0
    %243 = vmatpush1.xpose.msra.mxu0 0.0
    %244 = vmatprep.subr.mxu0 0.0
    %245 = vmatpush1.xpose.msra.mxu0 0.0
    %246 = vmatprep.subr.mxu0 0.0
    %247 = vmatpush1.xpose.msra.mxu0 0.0
    %248 = vmatprep.subr.mxu0 0.0
    %249 = vmatpush1.xpose.msra.mxu0 0.0
    %250 = vmatprep.subr.mxu0 0.0
    %251 = vmatpush1.xpose.msra.mxu0 0.0
    %252 = vmatprep.subr.mxu0 0.0
    %253 = vmatpush1.xpose.msra.mxu0 0.0
    %254 = vmatprep.subr.mxu0 0.0
    %255 = vmatpush1.xpose.msra.mxu0 0.0
    %256 = vmatprep.subr.mxu0 0.0
    %257 = vmatpush1.xpose.msra.mxu0 0.0
    %258 = vmatprep.subr.mxu0 0.0
    %259 = vmatpush1.xpose.msra.mxu0 0.0
    %260 = vmatprep.subr.mxu0 0.0
    %261 = vmatpush1.xpose.msra.mxu0 0.0
    %262 = vmatprep.subr.mxu0 0.0
    %263 = vmatpush1.xpose.msra.mxu0 0.0
    %264 = vmatprep.subr.mxu0 0.0
    %265 = vmatpush1.xpose.msra.mxu0 0.0
    %266 = vmatprep.subr.mxu0 0.0
    %267 = vmatpush1.xpose.msra.mxu0 0.0
    %268 = vmatprep.subr.mxu0 0.0
    %269 = vmatpush1.xpose.msra.mxu0 0.0
    %270 = vmatprep.subr.mxu0 0.0
    %271 = vmatpush1.xpose.msra.mxu0 0.0
    %272 = vmatprep.subr.mxu0 0.0
    %273 = vmatpush1.xpose.msra.mxu0 0.0
    %274 = vmatprep.subr.mxu0 0.0
    %275 = vmatpush1.xpose.msra.mxu0 0.0
    %276 = vmatprep.subr.mxu0 0.0
    %277 = vmatpush1.xpose.msra.mxu0 0.0
    %278 = vmatprep.subr.mxu0 0.0
    %279 = vmatpush1.xpose.msra.mxu0 0.0
    %280 = vmatprep.subr.mxu0 0.0
    %281 = vmatpush1.xpose.msra.mxu0 0.0
    %282 = vmatprep.subr.mxu0 0.0
    %283 = vmatpush1.xpose.msra.mxu0 0.0
    %284 = vmatprep.subr.mxu0 0.0
    %285 = vmatpush1.xpose.msra.mxu0 0.0
    %286 = vmatprep.mubr.f32.mxu0 0.0
    %287 = vmatmul.mubr.f32.gmra.mrb[0].mxu0 %v217
    %v288 = vpop.f32.mrb[0].mxu0
    %v289 = vadd.f32 0.0, %v288
    %v290 = vpop.f32.mrb[0].mxu0
    %291 = vmatprep.mubr.f32.mxu0 0.0
    %292 = vmatmul.mubr.f32.gmra.mrb[0].mxu0 %v220
    %v293 = vpop.f32.mrb[0].mxu0
    %v294 = vadd.f32 0.0, %v293
    %v295 = vpop.f32.mrb[0].mxu0
    %296 = vdwg.mxu0
    %297 = vmatprep.subr.mxu0 0.0
    %298 = vmatpush1.xpose.msra.mxu0 %v72
    %299 = vmatprep.subr.mxu0 0.0
    %300 = vmatpush1.xpose.msra.mxu0 %v75
    %301 = vmatprep.subr.mxu0 0.0
    %302 = vmatpush1.xpose.msra.mxu0 0.0
    %303 = vmatprep.subr.mxu0 0.0
    %304 = vmatpush1.xpose.msra.mxu0 0.0
    %305 = vmatprep.subr.mxu0 0.0
    %306 = vmatpush1.xpose.msra.mxu0 0.0
    %307 = vmatprep.subr.mxu0 0.0
    %308 = vmatpush1.xpose.msra.mxu0 0.0
    %309 = vmatprep.subr.mxu0 0.0
    %310 = vmatpush1.xpose.msra.mxu0 0.0
    %311 = vmatprep.subr.mxu0 0.0
    %312 = vmatpush1.xpose.msra.mxu0 0.0
    %313 = vmatprep.subr.mxu0 0.0
    %314 = vmatpush1.xpose.msra.mxu0 0.0
    %315 = vmatprep.subr.mxu0 0.0
    %316 = vmatpush1.xpose.msra.mxu0 0.0
    %317 = vmatprep.subr.mxu0 0.0
    %318 = vmatpush1.xpose.msra.mxu0 0.0
    %319 = vmatprep.subr.mxu0 0.0
    %320 = vmatpush1.xpose.msra.mxu0 0.0
    %321 = vmatprep.subr.mxu0 0.0
    %322 = vmatpush1.xpose.msra.mxu0 0.0
    %323 = vmatprep.subr.mxu0 0.0
    %324 = vmatpush1.xpose.msra.mxu0 0.0
    %325 = vmatprep.subr.mxu0 0.0
    %326 = vmatpush1.xpose.msra.mxu0 0.0
    %327 = vmatprep.subr.mxu0 0.0
    %328 = vmatpush1.xpose.msra.mxu0 0.0
    %329 = vmatprep.subr.mxu0 0.0
    %330 = vmatpush1.xpose.msra.mxu0 0.0
    %331 = vmatprep.subr.mxu0 0.0
    %332 = vmatpush1.xpose.msra.mxu0 0.0
    %333 = vmatprep.subr.mxu0 0.0
    %334 = vmatpush1.xpose.msra.mxu0 0.0
    %335 = vmatprep.subr.mxu0 0.0
    %336 = vmatpush1.xpose.msra.mxu0 0.0
    %337 = vmatprep.subr.mxu0 0.0
    %338 = vmatpush1.xpose.msra.mxu0 0.0
    %339 = vmatprep.subr.mxu0 0.0
    %340 = vmatpush1.xpose.msra.mxu0 0.0
    %341 = vmatprep.subr.mxu0 0.0
    %342 = vmatpush1.xpose.msra.mxu0 0.0
    %343 = vmatprep.subr.mxu0 0.0
    %344 = vmatpush1.xpose.msra.mxu0 0.0
    %345 = vmatprep.subr.mxu0 0.0
    %346 = vmatpush1.xpose.msra.mxu0 0.0
    %347 = vmatprep.subr.mxu0 0.0
    %348 = vmatpush1.xpose.msra.mxu0 0.0
    %349 = vmatprep.subr.mxu0 0.0
    %350 = vmatpush1.xpose.msra.mxu0 0.0
    %351 = vmatprep.subr.mxu0 0.0
    %352 = vmatpush1.xpose.msra.mxu0 0.0
    %353 = vmatprep.subr.mxu0 0.0
    %354 = vmatpush1.xpose.msra.mxu0 0.0
    %355 = vmatprep.subr.mxu0 0.0
    %356 = vmatpush1.xpose.msra.mxu0 0.0
    %357 = vmatprep.subr.mxu0 0.0
    %358 = vmatpush1.xpose.msra.mxu0 0.0
    %359 = vmatprep.subr.mxu0 0.0
    %360 = vmatpush1.xpose.msra.mxu0 0.0
    %361 = vmatprep.mubr.f32.mxu0 0.0
    %362 = vmatmul.mubr.f32.gmra.mrb[0].mxu0 %v217
    %v363 = vpop.f32.mrb[0].mxu0
    %v364 = vadd.f32 0.0, %v363
    %v365 = vpop.f32.mrb[0].mxu0
    %366 = vmatprep.mubr.f32.mxu0 0.0
    %367 = vmatmul.mubr.f32.gmra.mrb[0].mxu0 %v220
    %v368 = vpop.f32.mrb[0].mxu0
    %v369 = vadd.f32 0.0, %v368
    %v370 = vpop.f32.mrb[0].mxu0
    %371 = vdwg.mxu0
    %372 = vmatprep.subr.mxu0 0.0
    %373 = vmatpush1.xpose.msra.mxu0 %v217
    %374 = vmatprep.subr.mxu0 0.0
    %375 = vmatpush1.xpose.msra.mxu0 %v220
    %376 = vmatprep.subr.mxu0 0.0
    %377 = vmatpush1.xpose.msra.mxu0 0.0
    %378 = vmatprep.subr.mxu0 0.0
    %379 = vmatpush1.xpose.msra.mxu0 0.0
    %380 = vmatprep.subr.mxu0 0.0
    %381 = vmatpush1.xpose.msra.mxu0 0.0
    %382 = vmatprep.subr.mxu0 0.0
    %383 = vmatpush1.xpose.msra.mxu0 0.0
    %384 = vmatprep.subr.mxu0 0.0
    %385 = vmatpush1.xpose.msra.mxu0 0.0
    %386 = vmatprep.subr.mxu0 0.0
    %387 = vmatpush1.xpose.msra.mxu0 0.0
    %388 = vmatprep.subr.mxu0 0.0
    %389 = vmatpush1.xpose.msra.mxu0 0.0
    %390 = vmatprep.subr.mxu0 0.0
    %391 = vmatpush1.xpose.msra.mxu0 0.0
    %392 = vmatprep.subr.mxu0 0.0
    %393 = vmatpush1.xpose.msra.mxu0 0.0
    %394 = vmatprep.subr.mxu0 0.0
    %395 = vmatpush1.xpose.msra.mxu0 0.0
    %396 = vmatprep.subr.mxu0 0.0
    %397 = vmatpush1.xpose.msra.mxu0 0.0
    %398 = vmatprep.subr.mxu0 0.0
    %399 = vmatpush1.xpose.msra.mxu0 0.0
    %400 = vmatprep.subr.mxu0 0.0
    %401 = vmatpush1.xpose.msra.mxu0 0.0
    %402 = vmatprep.subr.mxu0 0.0
    %403 = vmatpush1.xpose.msra.mxu0 0.0
    %404 = vmatprep.subr.mxu0 0.0
    %405 = vmatpush1.xpose.msra.mxu0 0.0
    %406 = vmatprep.subr.mxu0 0.0
    %407 = vmatpush1.xpose.msra.mxu0 0.0
    %408 = vmatprep.subr.mxu0 0.0
    %409 = vmatpush1.xpose.msra.mxu0 0.0
    %410 = vmatprep.subr.mxu0 0.0
    %411 = vmatpush1.xpose.msra.mxu0 0.0
    %412 = vmatprep.subr.mxu0 0.0
    %413 = vmatpush1.xpose.msra.mxu0 0.0
    %414 = vmatprep.subr.mxu0 0.0
    %415 = vmatpush1.xpose.msra.mxu0 0.0
    %416 = vmatprep.subr.mxu0 0.0
    %417 = vmatpush1.xpose.msra.mxu0 0.0
    %418 = vmatprep.subr.mxu0 0.0
    %419 = vmatpush1.xpose.msra.mxu0 0.0
    %420 = vmatprep.subr.mxu0 0.0
    %421 = vmatpush1.xpose.msra.mxu0 0.0
    %422 = vmatprep.subr.mxu0 0.0
    %423 = vmatpush1.xpose.msra.mxu0 0.0
    %424 = vmatprep.subr.mxu0 0.0
    %425 = vmatpush1.xpose.msra.mxu0 0.0
    %426 = vmatprep.subr.mxu0 0.0
    %427 = vmatpush1.xpose.msra.mxu0 0.0
    %428 = vmatprep.subr.mxu0 0.0
    %429 = vmatpush1.xpose.msra.mxu0 0.0
    %430 = vmatprep.subr.mxu0 0.0
    %431 = vmatpush1.xpose.msra.mxu0 0.0
    %432 = vmatprep.subr.mxu0 0.0
    %433 = vmatpush1.xpose.msra.mxu0 0.0
    %434 = vmatprep.subr.mxu0 0.0
    %435 = vmatpush1.xpose.msra.mxu0 0.0
    %436 = vmatprep.mubr.f32.mxu0 0.0
    %437 = vmatmul.mubr.f32.gmra.mrb[0].mxu0 %v72
    %v438 = vpop.f32.mrb[0].mxu0
    %v439 = vadd.f32 0.0, %v438
    %v440 = vpop.f32.mrb[0].mxu0
    %441 = vmatprep.mubr.f32.mxu0 0.0
    %442 = vmatmul.mubr.f32.gmra.mrb[0].mxu0 %v75
    %v443 = vpop.f32.mrb[0].mxu0
    %v444 = vadd.f32 0.0, %v443
    %v445 = vpop.f32.mrb[0].mxu0
    %446 = vdwg.mxu0
    %447 = vxpose.xlu0.b32.start [1/16] %v212, 128
    %448 = vxpose.xlu0.b32.cont [2/16] %v215, 128
    %449 = vxpose.xlu0.b32.cont [3/16] 0.0, 128
    %450 = vxpose.xlu0.b32.cont [4/16] 0.0, 128
    %451 = vxpose.xlu0.b32.cont [5/16] 0.0, 128
    %452 = vxpose.xlu0.b32.cont [6/16] 0.0, 128
    %453 = vxpose.xlu0.b32.cont [7/16] 0.0, 128
    %454 = vxpose.xlu0.b32.cont [8/16] 0.0, 128
    %455 = vxpose.xlu0.b32.cont [9/16] 0.0, 128
    %456 = vxpose.xlu0.b32.cont [10/16] 0.0, 128
    %457 = vxpose.xlu0.b32.cont [11/16] 0.0, 128
    %458 = vxpose.xlu0.b32.cont [12/16] 0.0, 128
    %459 = vxpose.xlu0.b32.cont [13/16] 0.0, 128
    %460 = vxpose.xlu0.b32.cont [14/16] 0.0, 128
    %461 = vxpose.xlu0.b32.cont [15/16] 0.0, 128
    %462 = vxpose.xlu0.b32.end [16/16] 0.0, 128
    %v463 = vpop.trf.xlu0
    %v464 = vpop.trf.xlu0
    %v465 = vpop.trf.xlu0
    %v466 = vpop.trf.xlu0
    %v467 = vpop.trf.xlu0
    %v468 = vpop.trf.xlu0
    %v469 = vpop.trf.xlu0
    %v470 = vpop.trf.xlu0
    %v471 = vpop.trf.xlu0
    %v472 = vpop.trf.xlu0
    %v473 = vpop.trf.xlu0
    %v474 = vpop.trf.xlu0
    %v475 = vpop.trf.xlu0
    %v476 = vpop.trf.xlu0
    %v477 = vpop.trf.xlu0
    %v478 = vpop.trf.xlu0
    %v479 = vlaneseq
    %v480 = vshrl.u32 %v479, 7
    %v481 = vsub.s32 0, %v480
    %v482 = vrot.slane %v463, %v481
    %v483 = vadd.f32 %v212, %v482
    %v484 = vadd.f32 %v215, %v482
    %v485 = vmul.f32 %v289, 2.0
    %v486 = vmul.f32 %v294, 2.0
    %v487 = vsub.f32 %v483, %v485
    %v488 = vsub.f32 %v484, %v486
    %v489 = vmax.f32 %v487, 0.0
    %v490 = vmax.f32 %v488, 0.0
    %v491 = vadd.f32 %v212, %v187
    %v492 = vadd.f32 %v215, %v187
    %v493 = vmul.f32 %v364, 2.0
    %v494 = vmul.f32 %v369, 2.0
    %v495 = vsub.f32 %v491, %v493
    %v496 = vsub.f32 %v492, %v494
    %v497 = vmax.f32 %v495, 0.0
    %v498 = vmax.f32 %v496, 0.0
    %v499 = vadd.f32 %v67, %v482
    %v500 = vadd.f32 %v70, %v482
    %v501 = vmul.f32 %v439, 2.0
    %v502 = vmul.f32 %v444, 2.0
    %v503 = vsub.f32 %v499, %v501
    %v504 = vsub.f32 %v500, %v502
    %v505 = vmax.f32 %v503, 0.0
    %v506 = vmax.f32 %v504, 0.0
    %v507 = vsel %vm64, %v489, 0.0
    %v508 = vsel %vm64, %v490, 0.0
    %v509 = vadd.f32 %v507, %v508
    %510 = vadd.xlane.f32.xlu0 %v509
    %v511 = vpop.xlane.xlu0 %510
    %v512 = vrot.slane %v511, 4
    %v513 = vadd.f32 %v511, %v512
    %v514 = vrot.slane %v513, 2
    %v515 = vadd.f32 %v513, %v514
    %v516 = vrot.slane %v515, 1
    %v517 = vadd.f32 %v515, %v516
    %s518 = vtos %v517
    %v519 = vsel %vm64, %v497, 0.0
    %v520 = vsel %vm64, %v498, 0.0
    %v521 = vadd.f32 %v519, %v520
    %522 = vadd.xlane.f32.xlu0 %v521
    %v523 = vpop.xlane.xlu0 %522
    %v524 = vrot.slane %v523, 4
    %v525 = vadd.f32 %v523, %v524
    %v526 = vrot.slane %v525, 2
    %v527 = vadd.f32 %v525, %v526
    %v528 = vrot.slane %v527, 1
    %v529 = vadd.f32 %v527, %v528
    %s530 = vtos %v529
    %s531 = sadd.f32 %s518, %s530
    %v532 = vsel %vm64, %v505, 0.0
    %v533 = vsel %vm64, %v506, 0.0
    %v534 = vadd.f32 %v532, %v533
    %535 = vadd.xlane.f32.xlu0 %v534
    %v536 = vpop.xlane.xlu0 %535
    %v537 = vrot.slane %v536, 4
    %v538 = vadd.f32 %v536, %v537
    %v539 = vrot.slane %v538, 2
    %v540 = vadd.f32 %v538, %v539
    %v541 = vrot.slane %v540, 1
    %v542 = vadd.f32 %v540, %v541
    %s543 = vtos %v542
    %s544 = sadd.f32 %s531, %s543
    %s545 = sadd.f32 %s544, %s207
    %v546 = vrcp.pop 992.0
    %s547 = vtos %v546
    %s548 = smul.f32 %s545, %s547
    %v549 = vrcp.pop 4.0
    %s550 = vtos %v549
    %s551 = smul.f32 %s548, %s550
    %v552 = vstv %s551
    %v553 = vrcp.pop %v552
    %s554 = vtos %v553
    %s555 = smul.f32 -1.0, %s554
    %v556 = vstv %s555
    %v557 = vmul.f32 %v489, %v556
    %v558 = vmul.f32 %v490, %v556
    %v559 = vmul.f32 %v557, 1.442695
    %v560 = vpow.pop %v559
    %v561 = vmul.f32 %v558, 1.442695
    %v562 = vpow.pop %v561
    %v563 = vmul.f32 %v557, 0.5
    %v564 = vmul.f32 %v558, 0.5
    %v565 = vmul.f32 %v563, 1.442695
    %v566 = vpow.pop %v565
    %v567 = vmul.f32 %v564, 1.442695
    %v568 = vpow.pop %v567
    %v569 = vadd.f32 %v560, %v566
    %v570 = vadd.f32 %v562, %v568
    %v571 = vmul.f32 %v557, 0.25
    %v572 = vmul.f32 %v558, 0.25
    %v573 = vmul.f32 %v571, 1.442695
    %v574 = vpow.pop %v573
    %v575 = vmul.f32 %v572, 1.442695
    %v576 = vpow.pop %v575
    %v577 = vadd.f32 %v569, %v574
    %v578 = vadd.f32 %v570, %v576
    %v579 = vmul.f32 %v557, 0.125
    %v580 = vmul.f32 %v558, 0.125
    %v581 = vmul.f32 %v579, 1.442695
    %v582 = vpow.pop %v581
    %v583 = vmul.f32 %v580, 1.442695
    %v584 = vpow.pop %v583
    %v585 = vadd.f32 %v577, %v582
    %v586 = vadd.f32 %v578, %v584
    %v587 = vmul.f32 %v557, 0.0625
    %v588 = vmul.f32 %v558, 0.0625
    %v589 = vmul.f32 %v587, 1.442695
    %v590 = vpow.pop %v589
    %v591 = vmul.f32 %v588, 1.442695
    %v592 = vpow.pop %v591
    %v593 = vadd.f32 %v585, %v590
    %v594 = vadd.f32 %v586, %v592
    %v595 = vmul.f32 %v497, %v556
    %v596 = vmul.f32 %v498, %v556
    %v597 = vmul.f32 %v595, 1.442695
    %v598 = vpow.pop %v597
    %v599 = vmul.f32 %v596, 1.442695
    %v600 = vpow.pop %v599
    %v601 = vmul.f32 %v595, 0.5
    %v602 = vmul.f32 %v596, 0.5
    %v603 = vmul.f32 %v601, 1.442695
    %v604 = vpow.pop %v603
    %v605 = vmul.f32 %v602, 1.442695
    %v606 = vpow.pop %v605
    %v607 = vadd.f32 %v598, %v604
    %v608 = vadd.f32 %v600, %v606
    %v609 = vmul.f32 %v595, 0.25
    %v610 = vmul.f32 %v596, 0.25
    %v611 = vmul.f32 %v609, 1.442695
    %v612 = vpow.pop %v611
    %v613 = vmul.f32 %v610, 1.442695
    %v614 = vpow.pop %v613
    %v615 = vadd.f32 %v607, %v612
    %v616 = vadd.f32 %v608, %v614
    %v617 = vmul.f32 %v595, 0.125
    %v618 = vmul.f32 %v596, 0.125
    %v619 = vmul.f32 %v617, 1.442695
    %v620 = vpow.pop %v619
    %v621 = vmul.f32 %v618, 1.442695
    %v622 = vpow.pop %v621
    %v623 = vadd.f32 %v615, %v620
    %v624 = vadd.f32 %v616, %v622
    %v625 = vmul.f32 %v595, 0.0625
    %v626 = vmul.f32 %v596, 0.0625
    %v627 = vmul.f32 %v625, 1.442695
    %v628 = vpow.pop %v627
    %v629 = vmul.f32 %v626, 1.442695
    %v630 = vpow.pop %v629
    %v631 = vadd.f32 %v623, %v628
    %v632 = vadd.f32 %v624, %v630
    %v633 = vmul.f32 %v505, %v556
    %v634 = vmul.f32 %v506, %v556
    %v635 = vmul.f32 %v633, 1.442695
    %v636 = vpow.pop %v635
    %v637 = vmul.f32 %v634, 1.442695
    %v638 = vpow.pop %v637
    %v639 = vmul.f32 %v633, 0.5
    %v640 = vmul.f32 %v634, 0.5
    %v641 = vmul.f32 %v639, 1.442695
    %v642 = vpow.pop %v641
    %v643 = vmul.f32 %v640, 1.442695
    %v644 = vpow.pop %v643
    %v645 = vadd.f32 %v636, %v642
    %v646 = vadd.f32 %v638, %v644
    %v647 = vmul.f32 %v633, 0.25
    %v648 = vmul.f32 %v634, 0.25
    %v649 = vmul.f32 %v647, 1.442695
    %v650 = vpow.pop %v649
    %v651 = vmul.f32 %v648, 1.442695
    %v652 = vpow.pop %v651
    %v653 = vadd.f32 %v645, %v650
    %v654 = vadd.f32 %v646, %v652
    %v655 = vmul.f32 %v633, 0.125
    %v656 = vmul.f32 %v634, 0.125
    %v657 = vmul.f32 %v655, 1.442695
    %v658 = vpow.pop %v657
    %v659 = vmul.f32 %v656, 1.442695
    %v660 = vpow.pop %v659
    %v661 = vadd.f32 %v653, %v658
    %v662 = vadd.f32 %v654, %v660
    %v663 = vmul.f32 %v633, 0.0625
    %v664 = vmul.f32 %v634, 0.0625
    %v665 = vmul.f32 %v663, 1.442695
    %v666 = vpow.pop %v665
    %v667 = vmul.f32 %v664, 1.442695
    %v668 = vpow.pop %v667
    %v669 = vadd.f32 %v661, %v666
    %v670 = vadd.f32 %v662, %v668
    %v671 = vmul.f32 %v194, %v556
    %v672 = vmul.f32 %v195, %v556
    %v673 = vmul.f32 %v671, 1.442695
    %v674 = vpow.pop %v673
    %v675 = vmul.f32 %v672, 1.442695
    %v676 = vpow.pop %v675
    %v677 = vmul.f32 %v671, 0.5
    %v678 = vmul.f32 %v672, 0.5
    %v679 = vmul.f32 %v677, 1.442695
    %v680 = vpow.pop %v679
    %v681 = vmul.f32 %v678, 1.442695
    %v682 = vpow.pop %v681
    %v683 = vadd.f32 %v674, %v680
    %v684 = vadd.f32 %v676, %v682
    %v685 = vmul.f32 %v671, 0.25
    %v686 = vmul.f32 %v672, 0.25
    %v687 = vmul.f32 %v685, 1.442695
    %v688 = vpow.pop %v687
    %v689 = vmul.f32 %v686, 1.442695
    %v690 = vpow.pop %v689
    %v691 = vadd.f32 %v683, %v688
    %v692 = vadd.f32 %v684, %v690
    %v693 = vmul.f32 %v671, 0.125
    %v694 = vmul.f32 %v672, 0.125
    %v695 = vmul.f32 %v693, 1.442695
    %v696 = vpow.pop %v695
    %v697 = vmul.f32 %v694, 1.442695
    %v698 = vpow.pop %v697
    %v699 = vadd.f32 %v691, %v696
    %v700 = vadd.f32 %v692, %v698
    %v701 = vmul.f32 %v671, 0.0625
    %v702 = vmul.f32 %v672, 0.0625
    %v703 = vmul.f32 %v701, 1.442695
    %v704 = vpow.pop %v703
    %v705 = vmul.f32 %v702, 1.442695
    %v706 = vpow.pop %v705
    %v707 = vadd.f32 %v699, %v704
    %v708 = vadd.f32 %v700, %v706
    %v709 = vmul.f32 %v58, %v58
    %v710 = vmul.f32 %v59, %v59
    %v711 = vsel %vm64, %v709, 0.0
    %712 = vadd.xlane.f32.xlu0 %v711
    %v713 = vpop.xlane.xlu0 %712
    %v714 = vsel %vm64, %v710, 0.0
    %715 = vadd.xlane.f32.xlu0 %v714
    %v716 = vpop.xlane.xlu0 %715
    %v718 = vsel %vm64, %v58, 0
    %v721 = vsel %vm64, %v59, 0
    %723 = vmatprep.subr.mxu0 0.0
    %724 = vmatpush1.xpose.msra.mxu0 %v718
    %725 = vmatprep.subr.mxu0 0.0
    %726 = vmatpush1.xpose.msra.mxu0 %v721
    %727 = vmatprep.subr.mxu0 0.0
    %728 = vmatpush1.xpose.msra.mxu0 0.0
    %729 = vmatprep.subr.mxu0 0.0
    %730 = vmatpush1.xpose.msra.mxu0 0.0
    %731 = vmatprep.subr.mxu0 0.0
    %732 = vmatpush1.xpose.msra.mxu0 0.0
    %733 = vmatprep.subr.mxu0 0.0
    %734 = vmatpush1.xpose.msra.mxu0 0.0
    %735 = vmatprep.subr.mxu0 0.0
    %736 = vmatpush1.xpose.msra.mxu0 0.0
    %737 = vmatprep.subr.mxu0 0.0
    %738 = vmatpush1.xpose.msra.mxu0 0.0
    %739 = vmatprep.subr.mxu0 0.0
    %740 = vmatpush1.xpose.msra.mxu0 0.0
    %741 = vmatprep.subr.mxu0 0.0
    %742 = vmatpush1.xpose.msra.mxu0 0.0
    %743 = vmatprep.subr.mxu0 0.0
    %744 = vmatpush1.xpose.msra.mxu0 0.0
    %745 = vmatprep.subr.mxu0 0.0
    %746 = vmatpush1.xpose.msra.mxu0 0.0
    %747 = vmatprep.subr.mxu0 0.0
    %748 = vmatpush1.xpose.msra.mxu0 0.0
    %749 = vmatprep.subr.mxu0 0.0
    %750 = vmatpush1.xpose.msra.mxu0 0.0
    %751 = vmatprep.subr.mxu0 0.0
    %752 = vmatpush1.xpose.msra.mxu0 0.0
    %753 = vmatprep.subr.mxu0 0.0
    %754 = vmatpush1.xpose.msra.mxu0 0.0
    %755 = vmatprep.subr.mxu0 0.0
    %756 = vmatpush1.xpose.msra.mxu0 0.0
    %757 = vmatprep.subr.mxu0 0.0
    %758 = vmatpush1.xpose.msra.mxu0 0.0
    %759 = vmatprep.subr.mxu0 0.0
    %760 = vmatpush1.xpose.msra.mxu0 0.0
    %761 = vmatprep.subr.mxu0 0.0
    %762 = vmatpush1.xpose.msra.mxu0 0.0
    %763 = vmatprep.subr.mxu0 0.0
    %764 = vmatpush1.xpose.msra.mxu0 0.0
    %765 = vmatprep.subr.mxu0 0.0
    %766 = vmatpush1.xpose.msra.mxu0 0.0
    %767 = vmatprep.subr.mxu0 0.0
    %768 = vmatpush1.xpose.msra.mxu0 0.0
    %769 = vmatprep.subr.mxu0 0.0
    %770 = vmatpush1.xpose.msra.mxu0 0.0
    %771 = vmatprep.subr.mxu0 0.0
    %772 = vmatpush1.xpose.msra.mxu0 0.0
    %773 = vmatprep.subr.mxu0 0.0
    %774 = vmatpush1.xpose.msra.mxu0 0.0
    %775 = vmatprep.subr.mxu0 0.0
    %776 = vmatpush1.xpose.msra.mxu0 0.0
    %777 = vmatprep.subr.mxu0 0.0
    %778 = vmatpush1.xpose.msra.mxu0 0.0
    %779 = vmatprep.subr.mxu0 0.0
    %780 = vmatpush1.xpose.msra.mxu0 0.0
    %781 = vmatprep.subr.mxu0 0.0
    %782 = vmatpush1.xpose.msra.mxu0 0.0
    %783 = vmatprep.subr.mxu0 0.0
    %784 = vmatpush1.xpose.msra.mxu0 0.0
    %785 = vmatprep.subr.mxu0 0.0
    %786 = vmatpush1.xpose.msra.mxu0 0.0
    %787 = vmatprep.mubr.f32.mxu0 0.0
    %788 = vmatmul.mubr.f32.gmra.mrb[0].mxu0 %v718
    %v789 = vpop.f32.mrb[0].mxu0
    %v790 = vadd.f32 0.0, %v789
    %v791 = vpop.f32.mrb[0].mxu0
    %792 = vmatprep.mubr.f32.mxu0 0.0
    %793 = vmatmul.mubr.f32.gmra.mrb[0].mxu0 %v721
    %v794 = vpop.f32.mrb[0].mxu0
    %v795 = vadd.f32 0.0, %v794
    %v796 = vpop.f32.mrb[0].mxu0
    %797 = vdwg.mxu0
    %798 = vmatprep.subr.mxu0 0.0
    %799 = vmatpush1.xpose.msra.mxu0 %v72
    %800 = vmatprep.subr.mxu0 0.0
    %801 = vmatpush1.xpose.msra.mxu0 %v75
    %802 = vmatprep.subr.mxu0 0.0
    %803 = vmatpush1.xpose.msra.mxu0 0.0
    %804 = vmatprep.subr.mxu0 0.0
    %805 = vmatpush1.xpose.msra.mxu0 0.0
    %806 = vmatprep.subr.mxu0 0.0
    %807 = vmatpush1.xpose.msra.mxu0 0.0
    %808 = vmatprep.subr.mxu0 0.0
    %809 = vmatpush1.xpose.msra.mxu0 0.0
    %810 = vmatprep.subr.mxu0 0.0
    %811 = vmatpush1.xpose.msra.mxu0 0.0
    %812 = vmatprep.subr.mxu0 0.0
    %813 = vmatpush1.xpose.msra.mxu0 0.0
    %814 = vmatprep.subr.mxu0 0.0
    %815 = vmatpush1.xpose.msra.mxu0 0.0
    %816 = vmatprep.subr.mxu0 0.0
    %817 = vmatpush1.xpose.msra.mxu0 0.0
    %818 = vmatprep.subr.mxu0 0.0
    %819 = vmatpush1.xpose.msra.mxu0 0.0
    %820 = vmatprep.subr.mxu0 0.0
    %821 = vmatpush1.xpose.msra.mxu0 0.0
    %822 = vmatprep.subr.mxu0 0.0
    %823 = vmatpush1.xpose.msra.mxu0 0.0
    %824 = vmatprep.subr.mxu0 0.0
    %825 = vmatpush1.xpose.msra.mxu0 0.0
    %826 = vmatprep.subr.mxu0 0.0
    %827 = vmatpush1.xpose.msra.mxu0 0.0
    %828 = vmatprep.subr.mxu0 0.0
    %829 = vmatpush1.xpose.msra.mxu0 0.0
    %830 = vmatprep.subr.mxu0 0.0
    %831 = vmatpush1.xpose.msra.mxu0 0.0
    %832 = vmatprep.subr.mxu0 0.0
    %833 = vmatpush1.xpose.msra.mxu0 0.0
    %834 = vmatprep.subr.mxu0 0.0
    %835 = vmatpush1.xpose.msra.mxu0 0.0
    %836 = vmatprep.subr.mxu0 0.0
    %837 = vmatpush1.xpose.msra.mxu0 0.0
    %838 = vmatprep.subr.mxu0 0.0
    %839 = vmatpush1.xpose.msra.mxu0 0.0
    %840 = vmatprep.subr.mxu0 0.0
    %841 = vmatpush1.xpose.msra.mxu0 0.0
    %842 = vmatprep.subr.mxu0 0.0
    %843 = vmatpush1.xpose.msra.mxu0 0.0
    %844 = vmatprep.subr.mxu0 0.0
    %845 = vmatpush1.xpose.msra.mxu0 0.0
    %846 = vmatprep.subr.mxu0 0.0
    %847 = vmatpush1.xpose.msra.mxu0 0.0
    %848 = vmatprep.subr.mxu0 0.0
    %849 = vmatpush1.xpose.msra.mxu0 0.0
    %850 = vmatprep.subr.mxu0 0.0
    %851 = vmatpush1.xpose.msra.mxu0 0.0
    %852 = vmatprep.subr.mxu0 0.0
    %853 = vmatpush1.xpose.msra.mxu0 0.0
    %854 = vmatprep.subr.mxu0 0.0
    %855 = vmatpush1.xpose.msra.mxu0 0.0
    %856 = vmatprep.subr.mxu0 0.0
    %857 = vmatpush1.xpose.msra.mxu0 0.0
    %858 = vmatprep.subr.mxu0 0.0
    %859 = vmatpush1.xpose.msra.mxu0 0.0
    %860 = vmatprep.subr.mxu0 0.0
    %861 = vmatpush1.xpose.msra.mxu0 0.0
    %862 = vmatprep.mubr.f32.mxu0 0.0
    %863 = vmatmul.mubr.f32.gmra.mrb[0].mxu0 %v718
    %v864 = vpop.f32.mrb[0].mxu0
    %v865 = vadd.f32 0.0, %v864
    %v866 = vpop.f32.mrb[0].mxu0
    %867 = vmatprep.mubr.f32.mxu0 0.0
    %868 = vmatmul.mubr.f32.gmra.mrb[0].mxu0 %v721
    %v869 = vpop.f32.mrb[0].mxu0
    %v870 = vadd.f32 0.0, %v869
    %v871 = vpop.f32.mrb[0].mxu0
    %872 = vdwg.mxu0
    %873 = vmatprep.subr.mxu0 0.0
    %874 = vmatpush1.xpose.msra.mxu0 %v718
    %875 = vmatprep.subr.mxu0 0.0
    %876 = vmatpush1.xpose.msra.mxu0 %v721
    %877 = vmatprep.subr.mxu0 0.0
    %878 = vmatpush1.xpose.msra.mxu0 0.0
    %879 = vmatprep.subr.mxu0 0.0
    %880 = vmatpush1.xpose.msra.mxu0 0.0
    %881 = vmatprep.subr.mxu0 0.0
    %882 = vmatpush1.xpose.msra.mxu0 0.0
    %883 = vmatprep.subr.mxu0 0.0
    %884 = vmatpush1.xpose.msra.mxu0 0.0
    %885 = vmatprep.subr.mxu0 0.0
    %886 = vmatpush1.xpose.msra.mxu0 0.0
    %887 = vmatprep.subr.mxu0 0.0
    %888 = vmatpush1.xpose.msra.mxu0 0.0
    %889 = vmatprep.subr.mxu0 0.0
    %890 = vmatpush1.xpose.msra.mxu0 0.0
    %891 = vmatprep.subr.mxu0 0.0
    %892 = vmatpush1.xpose.msra.mxu0 0.0
    %893 = vmatprep.subr.mxu0 0.0
    %894 = vmatpush1.xpose.msra.mxu0 0.0
    %895 = vmatprep.subr.mxu0 0.0
    %896 = vmatpush1.xpose.msra.mxu0 0.0
    %897 = vmatprep.subr.mxu0 0.0
    %898 = vmatpush1.xpose.msra.mxu0 0.0
    %899 = vmatprep.subr.mxu0 0.0
    %900 = vmatpush1.xpose.msra.mxu0 0.0
    %901 = vmatprep.subr.mxu0 0.0
    %902 = vmatpush1.xpose.msra.mxu0 0.0
    %903 = vmatprep.subr.mxu0 0.0
    %904 = vmatpush1.xpose.msra.mxu0 0.0
    %905 = vmatprep.subr.mxu0 0.0
    %906 = vmatpush1.xpose.msra.mxu0 0.0
    %907 = vmatprep.subr.mxu0 0.0
    %908 = vmatpush1.xpose.msra.mxu0 0.0
    %909 = vmatprep.subr.mxu0 0.0
    %910 = vmatpush1.xpose.msra.mxu0 0.0
    %911 = vmatprep.subr.mxu0 0.0
    %912 = vmatpush1.xpose.msra.mxu0 0.0
    %913 = vmatprep.subr.mxu0 0.0
    %914 = vmatpush1.xpose.msra.mxu0 0.0
    %915 = vmatprep.subr.mxu0 0.0
    %916 = vmatpush1.xpose.msra.mxu0 0.0
    %917 = vmatprep.subr.mxu0 0.0
    %918 = vmatpush1.xpose.msra.mxu0 0.0
    %919 = vmatprep.subr.mxu0 0.0
    %920 = vmatpush1.xpose.msra.mxu0 0.0
    %921 = vmatprep.subr.mxu0 0.0
    %922 = vmatpush1.xpose.msra.mxu0 0.0
    %923 = vmatprep.subr.mxu0 0.0
    %924 = vmatpush1.xpose.msra.mxu0 0.0
    %925 = vmatprep.subr.mxu0 0.0
    %926 = vmatpush1.xpose.msra.mxu0 0.0
    %927 = vmatprep.subr.mxu0 0.0
    %928 = vmatpush1.xpose.msra.mxu0 0.0
    %929 = vmatprep.subr.mxu0 0.0
    %930 = vmatpush1.xpose.msra.mxu0 0.0
    %931 = vmatprep.subr.mxu0 0.0
    %932 = vmatpush1.xpose.msra.mxu0 0.0
    %933 = vmatprep.subr.mxu0 0.0
    %934 = vmatpush1.xpose.msra.mxu0 0.0
    %935 = vmatprep.subr.mxu0 0.0
    %936 = vmatpush1.xpose.msra.mxu0 0.0
    %937 = vmatprep.mubr.f32.mxu0 0.0
    %938 = vmatmul.mubr.f32.gmra.mrb[0].mxu0 %v72
    %v939 = vpop.f32.mrb[0].mxu0
    %v940 = vadd.f32 0.0, %v939
    %v941 = vpop.f32.mrb[0].mxu0
    %942 = vmatprep.mubr.f32.mxu0 0.0
    %943 = vmatmul.mubr.f32.gmra.mrb[0].mxu0 %v75
    %v944 = vpop.f32.mrb[0].mxu0
    %v945 = vadd.f32 0.0, %v944
    %v946 = vpop.f32.mrb[0].mxu0
    %947 = vdwg.mxu0
    %948 = vxpose.xlu0.b32.start [1/16] %v713, 128
    %949 = vxpose.xlu0.b32.cont [2/16] %v716, 128
    %950 = vxpose.xlu0.b32.cont [3/16] 0.0, 128
    %951 = vxpose.xlu0.b32.cont [4/16] 0.0, 128
    %952 = vxpose.xlu0.b32.cont [5/16] 0.0, 128
    %953 = vxpose.xlu0.b32.cont [6/16] 0.0, 128
    %954 = vxpose.xlu0.b32.cont [7/16] 0.0, 128
    %955 = vxpose.xlu0.b32.cont [8/16] 0.0, 128
    %956 = vxpose.xlu0.b32.cont [9/16] 0.0, 128
    %957 = vxpose.xlu0.b32.cont [10/16] 0.0, 128
    %958 = vxpose.xlu0.b32.cont [11/16] 0.0, 128
    %959 = vxpose.xlu0.b32.cont [12/16] 0.0, 128
    %960 = vxpose.xlu0.b32.cont [13/16] 0.0, 128
    %961 = vxpose.xlu0.b32.cont [14/16] 0.0, 128
    %962 = vxpose.xlu0.b32.cont [15/16] 0.0, 128
    %963 = vxpose.xlu0.b32.end [16/16] 0.0, 128
    %v964 = vpop.trf.xlu0
    %v965 = vpop.trf.xlu0
    %v966 = vpop.trf.xlu0
    %v967 = vpop.trf.xlu0
    %v968 = vpop.trf.xlu0
    %v969 = vpop.trf.xlu0
    %v970 = vpop.trf.xlu0
    %v971 = vpop.trf.xlu0
    %v972 = vpop.trf.xlu0
    %v973 = vpop.trf.xlu0
    %v974 = vpop.trf.xlu0
    %v975 = vpop.trf.xlu0
    %v976 = vpop.trf.xlu0
    %v977 = vpop.trf.xlu0
    %v978 = vpop.trf.xlu0
    %v979 = vpop.trf.xlu0
    %v980 = vlaneseq
    %v981 = vshrl.u32 %v980, 7
    %v982 = vsub.s32 0, %v981
    %v983 = vrot.slane %v964, %v982
    %v984 = vadd.f32 %v713, %v983
    %v985 = vadd.f32 %v716, %v983
    %v986 = vmul.f32 %v790, 2.0
    %v987 = vmul.f32 %v795, 2.0
    %v988 = vsub.f32 %v984, %v986
    %v989 = vsub.f32 %v985, %v987
    %v990 = vmax.f32 %v988, 0.0
    %v991 = vmax.f32 %v989, 0.0
    %v992 = vadd.f32 %v713, %v187
    %v993 = vadd.f32 %v716, %v187
    %v994 = vmul.f32 %v865, 2.0
    %v995 = vmul.f32 %v870, 2.0
    %v996 = vsub.f32 %v992, %v994
    %v997 = vsub.f32 %v993, %v995
    %v998 = vmax.f32 %v996, 0.0
    %v999 = vmax.f32 %v997, 0.0
    %v1000 = vadd.f32 %v67, %v983
    %v1001 = vadd.f32 %v70, %v983
    %v1002 = vmul.f32 %v940, 2.0
    %v1003 = vmul.f32 %v945, 2.0
    %v1004 = vsub.f32 %v1000, %v1002
    %v1005 = vsub.f32 %v1001, %v1003
    %v1006 = vmax.f32 %v1004, 0.0
    %v1007 = vmax.f32 %v1005, 0.0
    %v1008 = vsel %vm64, %v990, 0.0
    %v1009 = vsel %vm64, %v991, 0.0
    %v1010 = vadd.f32 %v1008, %v1009
    %1011 = vadd.xlane.f32.xlu0 %v1010
    %v1012 = vpop.xlane.xlu0 %1011
    %v1013 = vrot.slane %v1012, 4
    %v1014 = vadd.f32 %v1012, %v1013
    %v1015 = vrot.slane %v1014, 2
    %v1016 = vadd.f32 %v1014, %v1015
    %v1017 = vrot.slane %v1016, 1
    %v1018 = vadd.f32 %v1016, %v1017
    %s1019 = vtos %v1018
    %v1020 = vsel %vm64, %v998, 0.0
    %v1021 = vsel %vm64, %v999, 0.0
    %v1022 = vadd.f32 %v1020, %v1021
    %1023 = vadd.xlane.f32.xlu0 %v1022
    %v1024 = vpop.xlane.xlu0 %1023
    %v1025 = vrot.slane %v1024, 4
    %v1026 = vadd.f32 %v1024, %v1025
    %v1027 = vrot.slane %v1026, 2
    %v1028 = vadd.f32 %v1026, %v1027
    %v1029 = vrot.slane %v1028, 1
    %v1030 = vadd.f32 %v1028, %v1029
    %s1031 = vtos %v1030
    %s1032 = sadd.f32 %s1019, %s1031
    %v1033 = vsel %vm64, %v1006, 0.0
    %v1034 = vsel %vm64, %v1007, 0.0
    %v1035 = vadd.f32 %v1033, %v1034
    %1036 = vadd.xlane.f32.xlu0 %v1035
    %v1037 = vpop.xlane.xlu0 %1036
    %v1038 = vrot.slane %v1037, 4
    %v1039 = vadd.f32 %v1037, %v1038
    %v1040 = vrot.slane %v1039, 2
    %v1041 = vadd.f32 %v1039, %v1040
    %v1042 = vrot.slane %v1041, 1
    %v1043 = vadd.f32 %v1041, %v1042
    %s1044 = vtos %v1043
    %s1045 = sadd.f32 %s1032, %s1044
    %s1046 = sadd.f32 %s1045, %s207
    %v1047 = vrcp.pop 992.0
    %s1048 = vtos %v1047
    %s1049 = smul.f32 %s1046, %s1048
    %v1050 = vrcp.pop 4.0
    %s1051 = vtos %v1050
    %s1052 = smul.f32 %s1049, %s1051
    %v1053 = vstv %s1052
    %v1054 = vrcp.pop %v1053
    %s1055 = vtos %v1054
    %s1056 = smul.f32 -1.0, %s1055
    %v1057 = vstv %s1056
    %v1058 = vmul.f32 %v990, %v1057
    %v1059 = vmul.f32 %v991, %v1057
    %v1060 = vmul.f32 %v1058, 1.442695
    %v1061 = vpow.pop %v1060
    %v1062 = vmul.f32 %v1059, 1.442695
    %v1063 = vpow.pop %v1062
    %v1064 = vmul.f32 %v1058, 0.5
    %v1065 = vmul.f32 %v1059, 0.5
    %v1066 = vmul.f32 %v1064, 1.442695
    %v1067 = vpow.pop %v1066
    %v1068 = vmul.f32 %v1065, 1.442695
    %v1069 = vpow.pop %v1068
    %v1070 = vadd.f32 %v1061, %v1067
    %v1071 = vadd.f32 %v1063, %v1069
    %v1072 = vmul.f32 %v1058, 0.25
    %v1073 = vmul.f32 %v1059, 0.25
    %v1074 = vmul.f32 %v1072, 1.442695
    %v1075 = vpow.pop %v1074
    %v1076 = vmul.f32 %v1073, 1.442695
    %v1077 = vpow.pop %v1076
    %v1078 = vadd.f32 %v1070, %v1075
    %v1079 = vadd.f32 %v1071, %v1077
    %v1080 = vmul.f32 %v1058, 0.125
    %v1081 = vmul.f32 %v1059, 0.125
    %v1082 = vmul.f32 %v1080, 1.442695
    %v1083 = vpow.pop %v1082
    %v1084 = vmul.f32 %v1081, 1.442695
    %v1085 = vpow.pop %v1084
    %v1086 = vadd.f32 %v1078, %v1083
    %v1087 = vadd.f32 %v1079, %v1085
    %v1088 = vmul.f32 %v1058, 0.0625
    %v1089 = vmul.f32 %v1059, 0.0625
    %v1090 = vmul.f32 %v1088, 1.442695
    %v1091 = vpow.pop %v1090
    %v1092 = vmul.f32 %v1089, 1.442695
    %v1093 = vpow.pop %v1092
    %v1094 = vadd.f32 %v1086, %v1091
    %v1095 = vadd.f32 %v1087, %v1093
    %v1096 = vmul.f32 %v998, %v1057
    %v1097 = vmul.f32 %v999, %v1057
    %v1098 = vmul.f32 %v1096, 1.442695
    %v1099 = vpow.pop %v1098
    %v1100 = vmul.f32 %v1097, 1.442695
    %v1101 = vpow.pop %v1100
    %v1102 = vmul.f32 %v1096, 0.5
    %v1103 = vmul.f32 %v1097, 0.5
    %v1104 = vmul.f32 %v1102, 1.442695
    %v1105 = vpow.pop %v1104
    %v1106 = vmul.f32 %v1103, 1.442695
    %v1107 = vpow.pop %v1106
    %v1108 = vadd.f32 %v1099, %v1105
    %v1109 = vadd.f32 %v1101, %v1107
    %v1110 = vmul.f32 %v1096, 0.25
    %v1111 = vmul.f32 %v1097, 0.25
    %v1112 = vmul.f32 %v1110, 1.442695
    %v1113 = vpow.pop %v1112
    %v1114 = vmul.f32 %v1111, 1.442695
    %v1115 = vpow.pop %v1114
    %v1116 = vadd.f32 %v1108, %v1113
    %v1117 = vadd.f32 %v1109, %v1115
    %v1118 = vmul.f32 %v1096, 0.125
    %v1119 = vmul.f32 %v1097, 0.125
    %v1120 = vmul.f32 %v1118, 1.442695
    %v1121 = vpow.pop %v1120
    %v1122 = vmul.f32 %v1119, 1.442695
    %v1123 = vpow.pop %v1122
    %v1124 = vadd.f32 %v1116, %v1121
    %v1125 = vadd.f32 %v1117, %v1123
    %v1126 = vmul.f32 %v1096, 0.0625
    %v1127 = vmul.f32 %v1097, 0.0625
    %v1128 = vmul.f32 %v1126, 1.442695
    %v1129 = vpow.pop %v1128
    %v1130 = vmul.f32 %v1127, 1.442695
    %v1131 = vpow.pop %v1130
    %v1132 = vadd.f32 %v1124, %v1129
    %v1133 = vadd.f32 %v1125, %v1131
    %v1134 = vmul.f32 %v1006, %v1057
    %v1135 = vmul.f32 %v1007, %v1057
    %v1136 = vmul.f32 %v1134, 1.442695
    %v1137 = vpow.pop %v1136
    %v1138 = vmul.f32 %v1135, 1.442695
    %v1139 = vpow.pop %v1138
    %v1140 = vmul.f32 %v1134, 0.5
    %v1141 = vmul.f32 %v1135, 0.5
    %v1142 = vmul.f32 %v1140, 1.442695
    %v1143 = vpow.pop %v1142
    %v1144 = vmul.f32 %v1141, 1.442695
    %v1145 = vpow.pop %v1144
    %v1146 = vadd.f32 %v1137, %v1143
    %v1147 = vadd.f32 %v1139, %v1145
    %v1148 = vmul.f32 %v1134, 0.25
    %v1149 = vmul.f32 %v1135, 0.25
    %v1150 = vmul.f32 %v1148, 1.442695
    %v1151 = vpow.pop %v1150
    %v1152 = vmul.f32 %v1149, 1.442695
    %v1153 = vpow.pop %v1152
    %v1154 = vadd.f32 %v1146, %v1151
    %v1155 = vadd.f32 %v1147, %v1153
    %v1156 = vmul.f32 %v1134, 0.125
    %v1157 = vmul.f32 %v1135, 0.125
    %v1158 = vmul.f32 %v1156, 1.442695
    %v1159 = vpow.pop %v1158
    %v1160 = vmul.f32 %v1157, 1.442695
    %v1161 = vpow.pop %v1160
    %v1162 = vadd.f32 %v1154, %v1159
    %v1163 = vadd.f32 %v1155, %v1161
    %v1164 = vmul.f32 %v1134, 0.0625
    %v1165 = vmul.f32 %v1135, 0.0625
    %v1166 = vmul.f32 %v1164, 1.442695
    %v1167 = vpow.pop %v1166
    %v1168 = vmul.f32 %v1165, 1.442695
    %v1169 = vpow.pop %v1168
    %v1170 = vadd.f32 %v1162, %v1167
    %v1171 = vadd.f32 %v1163, %v1169
    %v1172 = vmul.f32 %v194, %v1057
    %v1173 = vmul.f32 %v195, %v1057
    %v1174 = vmul.f32 %v1172, 1.442695
    %v1175 = vpow.pop %v1174
    %v1176 = vmul.f32 %v1173, 1.442695
    %v1177 = vpow.pop %v1176
    %v1178 = vmul.f32 %v1172, 0.5
    %v1179 = vmul.f32 %v1173, 0.5
    %v1180 = vmul.f32 %v1178, 1.442695
    %v1181 = vpow.pop %v1180
    %v1182 = vmul.f32 %v1179, 1.442695
    %v1183 = vpow.pop %v1182
    %v1184 = vadd.f32 %v1175, %v1181
    %v1185 = vadd.f32 %v1177, %v1183
    %v1186 = vmul.f32 %v1172, 0.25
    %v1187 = vmul.f32 %v1173, 0.25
    %v1188 = vmul.f32 %v1186, 1.442695
    %v1189 = vpow.pop %v1188
    %v1190 = vmul.f32 %v1187, 1.442695
    %v1191 = vpow.pop %v1190
    %v1192 = vadd.f32 %v1184, %v1189
    %v1193 = vadd.f32 %v1185, %v1191
    %v1194 = vmul.f32 %v1172, 0.125
    %v1195 = vmul.f32 %v1173, 0.125
    %v1196 = vmul.f32 %v1194, 1.442695
    %v1197 = vpow.pop %v1196
    %v1198 = vmul.f32 %v1195, 1.442695
    %v1199 = vpow.pop %v1198
    %v1200 = vadd.f32 %v1192, %v1197
    %v1201 = vadd.f32 %v1193, %v1199
    %v1202 = vmul.f32 %v1172, 0.0625
    %v1203 = vmul.f32 %v1173, 0.0625
    %v1204 = vmul.f32 %v1202, 1.442695
    %v1205 = vpow.pop %v1204
    %v1206 = vmul.f32 %v1203, 1.442695
    %v1207 = vpow.pop %v1206
    %v1208 = vadd.f32 %v1200, %v1205
    %v1209 = vadd.f32 %v1201, %v1207
    %v1210 = vmul.f32 %v593, 0.1
    %v1211 = vmul.f32 %v594, 0.1
    %v1212 = vsub.f32 0.1, %v1094
    %v1213 = vsub.f32 0.1, %v1095
    %v1214 = vmax.f32 %v1212, 0.0
    %v1215 = vmax.f32 %v1213, 0.0
    %v1216 = vmul.f32 %v1214, 0.01
    %v1217 = vmul.f32 %v1215, 0.01
    %v1218 = vadd.f32 %v1210, %v1216
    %v1219 = vadd.f32 %v1211, %v1217
    %v1220 = vmul.f32 %v631, 0.1
    %v1221 = vmul.f32 %v632, 0.1
    %v1222 = vsub.f32 0.1, %v1132
    %v1223 = vsub.f32 0.1, %v1133
    %v1224 = vmax.f32 %v1222, 0.0
    %v1225 = vmax.f32 %v1223, 0.0
    %v1226 = vmul.f32 %v1224, 0.01
    %v1227 = vmul.f32 %v1225, 0.01
    %v1228 = vadd.f32 %v1220, %v1226
    %v1229 = vadd.f32 %v1221, %v1227
    %v1230 = vmul.f32 %v669, 0.1
    %v1231 = vmul.f32 %v670, 0.1
    %v1232 = vsub.f32 0.1, %v1170
    %v1233 = vsub.f32 0.1, %v1171
    %v1234 = vmax.f32 %v1232, 0.0
    %v1235 = vmax.f32 %v1233, 0.0
    %v1236 = vmul.f32 %v1234, 0.01
    %v1237 = vmul.f32 %v1235, 0.01
    %v1238 = vadd.f32 %v1230, %v1236
    %v1239 = vadd.f32 %v1231, %v1237
    %v1240 = vmul.f32 %v707, 0.1
    %v1241 = vmul.f32 %v708, 0.1
    %v1242 = vsub.f32 0.1, %v1208
    %v1243 = vsub.f32 0.1, %v1209
    %v1244 = vmax.f32 %v1242, 0.0
    %v1245 = vmax.f32 %v1243, 0.0
    %v1246 = vmul.f32 %v1244, 0.01
    %v1247 = vmul.f32 %v1245, 0.01
    %v1248 = vadd.f32 %v1240, %v1246
    %v1249 = vadd.f32 %v1241, %v1247
    %1250 = vst.msk [vmem:[#allocation8] sm:$0xff] %vm64, %v1218
    %1251 = vst.msk [vmem:[#allocation8 + $0x8] sm:$0xff] %vm64, %v1219
    %1254 = vrot.lane.b32.xlu0 %v1228, 16
    %v1255 = vpop.permute.xlu0 %1254
    %1256 = vrot.lane.b32.xlu0 %v1229, 16
    %v1257 = vpop.permute.xlu0 %1256
    %vm1260 = vcmask 261248
    %1261 = vst.msk [vmem:[#allocation8] sm:$0xff] %vm1260, %v1255
    %1262 = vst.msk [vmem:[#allocation8 + $0x8] sm:$0xff] %vm1260, %v1257
    %1263 = vst.msk [vmem:[#allocation8 + $0x10] sm:$0xff] %vm64, %v1238
    %1264 = vst.msk [vmem:[#allocation8 + $0x18] sm:$0xff] %vm64, %v1239
    %1267 = vrot.lane.b32.xlu0 %v1248, 16
    %v1268 = vpop.permute.xlu0 %1267
    %1269 = vrot.lane.b32.xlu0 %v1249, 16
    %v1270 = vpop.permute.xlu0 %1269
    %1273 = vst.msk [vmem:[#allocation8 + $0x10] sm:$0xff] %vm1260, %v1268
    %1274 = vst.msk [vmem:[#allocation8 + $0x18] sm:$0xff] %vm1260, %v1270
    // Predicated region
    $region26: #{tpu_custom_call.1} parent=1 // pred_check
      _
    $region27: #{tpu_custom_call.1} parent=1 // pred_check_branch
      %1276 = sbr.rel (0) target = $region29
    $region28: #{tpu_custom_call.1} parent=1 // pred_region
      %s1278 = ssub.s32 512, 512
      %1279 = vsyncadd [#allocation4], %s1278
      %s1280 = sshll.u32 [#allocation8], 4
      %s1281 = int_to_ptr.vmem [resolvable:$true] %s1280
      %1286 = dma.vmem_to_hbm [thread:$0]  %s1281, 512, %s3, [#allocation4], 128, 128, 8
    $region29: #{tpu_custom_call.1} parent=1 // pred_fallthru
      _
    // Predicated region
    $region30: #{tpu_custom_call.1} parent=1 // pred_check
      _
    $region31: #{tpu_custom_call.1} parent=1 // pred_check_branch
      %1288 = sbr.rel (0) target = $region33
    $region32: #{tpu_custom_call.1} parent=1 // pred_region
      %1289 = dma.done [#allocation4], 512
    $region33: #{tpu_custom_call.1} parent=1 // pred_fallthru
      _
    %1290 = vsyncpa [#allocation3], 1
    %1291 = vsyncpa [#allocation6], 1
    %1292 = vsyncpa [#allocation4], 1

</llo_original>
